<compile_context>
chip_gen: v7x
topology: tpu7x:2x2x1
jax: 0.10.0
libtpu: 0.0.40
codegen_flags: <defaults>
</compile_context>

<pallas_src>
import numpy as np

import jax
import jax.numpy as jnp
from jax.experimental import pallas as pl
from jax.experimental.pallas import tpu as pltpu

EPS = 1e-5

# Tap order matches PyTorch kernel index (ky, kx) = (dy+1, dx+1), dx fastest.
_OFFSETS = [(dy, dx) for dy in (-1, 0, 1) for dx in (-1, 0, 1)]


def _edge_masks(H, W):
    """(9, 1, H*W) float32 0/1 masks zeroing taps that read across the border."""
    HW = H * W
    col = np.arange(HW) % W
    row = np.arange(HW) // W
    masks = np.ones((9, 1, HW), np.float32)
    for t, (dy, dx) in enumerate(_OFFSETS):
        m = np.ones(HW, np.float32)
        if dx == 1:
            m *= (col < W - 1)
        elif dx == -1:
            m *= (col > 0)
        if dy == 1:
            m *= (row < H - 1)
        elif dy == -1:
            m *= (row > 0)
        masks[t, 0] = m
    return jnp.asarray(masks)


def _make_bn_sig_conv_kernel(H, W, Cin, Cout, emit_stats):
    HW = H * W

    def kernel(x_ref, scale_ref, shift_ref, w_ref, b_ref, mask_ref,
               o_ref, *stat_refs):
        # x_ref:     (1, Cin, HW)   one image, channels on sublanes, HW on lanes
        # scale_ref: (Cin, 1)       folded BN scale = gamma / sqrt(var + eps)
        # shift_ref: (Cin, 1)       folded BN shift = beta - mean * scale
        # w_ref:     (9, Cout, Cin) conv taps, bf16
        # b_ref:     (Cout, 1)      conv bias
        # mask_ref:  (9, 1, HW)     0/1 border masks per tap
        # o_ref:     (1, Cout, HW)  output image (lane-dense)
        # stat_refs: optional ((1,Cout,1) sum, (1,Cout,1) sumsq) of the output

        # BN affine + sigmoid in f32 on full 128-lane vregs (sigmoid -> EUP).
        a = jax.nn.sigmoid(
            x_ref[0].astype(jnp.float32) * scale_ref[...] + shift_ref[...])

        acc = jnp.zeros((Cout, HW), jnp.float32)
        for t, (dy, dx) in enumerate(_OFFSETS):
            off = dy * W + dx
            # Shift so output lane p reads activation lane p + off (XLU roll).
            tap = a if off == 0 else pltpu.roll(a, shift=(-off) % HW, axis=1)
            if (dy, dx) != (0, 0):
                tap = tap * mask_ref[t]          # zero out-of-image reads
            acc = acc + jnp.dot(w_ref[t], tap.astype(jnp.bfloat16),
                                preferred_element_type=jnp.float32)
        acc = acc + b_ref[...]
        y = acc.astype(o_ref.dtype)
        o_ref[0] = y

        if emit_stats:
            # Per-channel sum / sum-of-squares of the (rounded) output, so the
            # next stage's BatchNorm stats need no extra HBM pass over y.
            sum_ref, sq_ref = stat_refs
            yf = y.astype(jnp.float32)
            sum_ref[0] = jnp.sum(yf, axis=1, keepdims=True)
            sq_ref[0] = jnp.sum(yf * yf, axis=1, keepdims=True)

    return kernel


def bn_sigmoid_conv3x3(x_ncl, scale, shift, w_hwio, conv_bias, H, W, out_dtype,
                       emit_stats=False):
    """One BN(folded scale/shift) -> sigmoid -> conv3x3(pad=1) stage.

    x_ncl: (N, Cin, H*W).  Returns (N, Cout, H*W) in out_dtype, and when
    emit_stats also per-image (N, Cout, 1) sum and sum-of-squares of the output.
    """
    N, Cin, HW = x_ncl.shape
    Cout = w_hwio.shape[-1]

    # HWIO (3,3,Cin,Cout) -> (9, Cout, Cin) bf16, tap-major (matches _OFFSETS).
    w_k = jnp.transpose(w_hwio, (0, 1, 3, 2)).reshape(9, Cout, Cin)
    w_k = w_k.astype(jnp.bfloat16)
    b2 = conv_bias.reshape(Cout, 1).astype(jnp.float32)
    masks = _edge_masks(H, W)

    y_shape = jax.ShapeDtypeStruct((N, Cout, HW), out_dtype)
    y_spec = pl.BlockSpec((1, Cout, HW), lambda n: (n, 0, 0))
    if emit_stats:
        stat_shape = jax.ShapeDtypeStruct((N, Cout, 1), jnp.float32)
        out_shape = (y_shape, stat_shape, stat_shape)
        out_specs = (y_spec,
                     pl.BlockSpec((1, Cout, 1), lambda n: (n, 0, 0)),
                     pl.BlockSpec((1, Cout, 1), lambda n: (n, 0, 0)))
    else:
        out_shape = y_shape
        out_specs = y_spec

    kernel = _make_bn_sig_conv_kernel(H, W, Cin, Cout, emit_stats)
    return pl.pallas_call(
        kernel,
        out_shape=out_shape,
        grid=(N,),
        in_specs=[
            pl.BlockSpec((1, Cin, HW), lambda n: (n, 0, 0)),
            pl.BlockSpec((Cin, 1), lambda n: (0, 0)),
            pl.BlockSpec((Cin, 1), lambda n: (0, 0)),
            pl.BlockSpec((9, Cout, Cin), lambda n: (0, 0, 0)),
            pl.BlockSpec((Cout, 1), lambda n: (0, 0)),
            pl.BlockSpec((9, 1, HW), lambda n: (0, 0, 0)),
        ],
        out_specs=out_specs,
        compiler_params=pltpu.CompilerParams(
            dimension_semantics=("parallel",)),
    )(x_ncl, scale, shift, w_k, b2, masks)


def _fold_bn(gamma, beta, mean, var):
    """Fold training-mode BN stats into per-channel (scale, shift) columns."""
    inv = gamma / jnp.sqrt(var + EPS)
    scale = inv.reshape(-1, 1).astype(jnp.float32)
    shift = (beta - mean * inv).reshape(-1, 1).astype(jnp.float32)
    return scale, shift


def continus_paralle_conv(x_nchw, params):
    """Full module forward (pre_Batch_Norm=True).  NCHW in, NCHW out."""
    N, Cin, H, W = x_nchw.shape
    HW = H * W
    Cout = params["w1"].shape[-1]
    x = x_nchw.reshape(N, Cin, HW).astype(jnp.float32)   # no transpose needed

    # Stage-1 BN: training-mode batch statistics over the input (plain JAX;
    # this is the only extra read pass over the input).
    mean1 = jnp.mean(x, axis=(0, 2))
    var1 = jnp.var(x, axis=(0, 2))
    s1, sh1 = _fold_bn(params["g1"], params["b1"], mean1, var1)

    # Stage 1: BN -> sigmoid -> conv3x3.  Intermediate kept as bf16 and its
    # per-channel sums/sumsq come back fused (no second HBM pass over y1).
    y1, ysum, ysq = bn_sigmoid_conv3x3(x, s1, sh1, params["w1"], params["cb1"],
                                       H, W, jnp.bfloat16, emit_stats=True)

    # Stage-2 BN stats from the fused partial sums (tiny (N, Cout) reduction).
    cnt = float(N * HW)
    tot = jnp.sum(ysum[:, :, 0], axis=0)
    totsq = jnp.sum(ysq[:, :, 0], axis=0)
    mean2 = tot / cnt
    var2 = jnp.maximum(totsq / cnt - mean2 * mean2, 0.0)
    s2, sh2 = _fold_bn(params["g2"], params["b2"], mean2, var2)

    # Stage 2: BN -> sigmoid -> conv3x3.
    y2 = bn_sigmoid_conv3x3(y1, s2, sh2, params["w2"], params["cb2"],
                            H, W, jnp.float32, emit_stats=False)
    return y2.reshape(N, Cout, H, W)


# ----------------------------- references ----------------------------------

def _ref_stage(x_nhwc, g, b, w_hwio, cb, *, matmul_dtype, round_out_bf16):
    m = jnp.mean(x_nhwc, axis=(0, 1, 2))
    v = jnp.var(x_nhwc, axis=(0, 1, 2))
    a = jax.nn.sigmoid((x_nhwc - m) / jnp.sqrt(v + EPS) * g + b)
    y = jax.lax.conv_general_dilated(
        a.astype(matmul_dtype), w_hwio.astype(matmul_dtype),
        window_strides=(1, 1), padding="SAME",
        dimension_numbers=("NHWC", "HWIO", "NHWC"),
        preferred_element_type=jnp.float32,
        precision=jax.lax.Precision.HIGHEST) + cb
    if round_out_bf16:
        y = y.astype(jnp.bfloat16).astype(jnp.float32)
    return y


def _ref_forward(x_nchw, params, *, matmul_dtype=jnp.float32,
                 round_intermediate=False):
    x = jnp.transpose(x_nchw, (0, 2, 3, 1)).astype(jnp.float32)
    y1 = _ref_stage(x, params["g1"], params["b1"], params["w1"], params["cb1"],
                    matmul_dtype=matmul_dtype, round_out_bf16=round_intermediate)
    y2 = _ref_stage(y1, params["g2"], params["b2"], params["w2"], params["cb2"],
                    matmul_dtype=matmul_dtype, round_out_bf16=False)
    return jnp.transpose(y2, (0, 3, 1, 2))


def init_params(key, in_channels, out_channels):
    """Deterministic parameter init mirroring the torch module's shapes."""
    k1, k2, k3, k4 = jax.random.split(key, 4)
    bound1 = 1.0 / jnp.sqrt(in_channels * 9.0)
    bound2 = 1.0 / jnp.sqrt(out_channels * 9.0)
    return {
        # BatchNorm2d(in_channels): weight=1, bias=0 at construction
        "g1": jnp.ones((in_channels,), jnp.float32),
        "b1": jnp.zeros((in_channels,), jnp.float32),
        # Conv2d(in, out, 3, padding=1)  (HWIO)
        "w1": jax.random.uniform(k1, (3, 3, in_channels, out_channels),
                                 jnp.float32, -bound1, bound1),
        "cb1": jax.random.uniform(k2, (out_channels,), jnp.float32, -bound1, bound1),
        # BatchNorm2d(out_channels)
        "g2": jnp.ones((out_channels,), jnp.float32),
        "b2": jnp.zeros((out_channels,), jnp.float32),
        # Conv2d(out, out, 3, padding=1)
        "w2": jax.random.uniform(k3, (3, 3, out_channels, out_channels),
                                 jnp.float32, -bound2, bound2),
        "cb2": jax.random.uniform(k4, (out_channels,), jnp.float32, -bound2, bound2),
    }


if __name__ == "__main__":
    key = jax.random.PRNGKey(0)
    kx, kp = jax.random.split(key)

    N, Cin, Cout, H, W = 2, 4, 8, 16, 16
    x = jax.random.normal(kx, (N, Cin, H, W), jnp.float32)   # NCHW, like PyTorch
    params = init_params(kp, Cin, Cout)

    out = jax.block_until_ready(jax.jit(continus_paralle_conv)(x, params))
    assert out.shape == (N, Cout, H, W), out.shape

    # Tight check vs a reference using the same bf16 matmul inputs /
    # bf16-rounded intermediate (isolates kernel-logic bugs).
    ref_m = jax.block_until_ready(
        _ref_forward(x, params, matmul_dtype=jnp.bfloat16,
                     round_intermediate=True))
    assert jnp.allclose(out, ref_m, atol=1e-2, rtol=1e-2), (
        float(jnp.max(jnp.abs(out - ref_m))))

    # Looser check vs the full-f32 reference (true module semantics; bf16
    # matmul operands introduce small quantization error).
    ref_f = jax.block_until_ready(_ref_forward(x, params))
    assert jnp.allclose(out, ref_f, atol=5e-2, rtol=5e-2), (
        float(jnp.max(jnp.abs(out - ref_f))))

    print("KERNEL_OK")
</pallas_src>

<mosaic_0001>
module attributes {stable_mosaic.version = 11 : i64} {
  func.func @kernel(%arg0: i32, %arg1: memref<1x8x256xbf16, #tpu.memory_space<vmem>>, %arg2: memref<8x1xf32, #tpu.memory_space<vmem>>, %arg3: memref<8x1xf32, #tpu.memory_space<vmem>>, %arg4: memref<9x8x8xbf16, #tpu.memory_space<vmem>>, %arg5: memref<8x1xf32, #tpu.memory_space<vmem>>, %arg6: memref<9x1x256xf32, #tpu.memory_space<vmem>>, %arg7: memref<1x8x256xf32, #tpu.memory_space<vmem>>) attributes {dimension_semantics = [#tpu.dimension_semantics<parallel>], iteration_bounds = array<i64: 2>, scalar_prefetch = 0 : i64, scratch_operands = 0 : i64, tpu.core_type = #tpu.core_type<tc>, window_params = [{transform_indices = @transform_0, window_bounds = array<i64: 1, 8, 256>}, {pipeline_mode = #tpu.pipeline_mode<synchronous>, transform_indices = @transform_1, window_bounds = array<i64: 8, 1>}, {pipeline_mode = #tpu.pipeline_mode<synchronous>, transform_indices = @transform_2, window_bounds = array<i64: 8, 1>}, {pipeline_mode = #tpu.pipeline_mode<synchronous>, transform_indices = @transform_3, window_bounds = array<i64: 9, 8, 8>}, {pipeline_mode = #tpu.pipeline_mode<synchronous>, transform_indices = @transform_4, window_bounds = array<i64: 8, 1>}, {pipeline_mode = #tpu.pipeline_mode<synchronous>, transform_indices = @transform_5, window_bounds = array<i64: 9, 1, 256>}, {transform_indices = @transform_6, window_bounds = array<i64: 1, 8, 256>}]} {
    %c0 = arith.constant 0 : index
    %c0_0 = arith.constant 0 : index
    %c0_1 = arith.constant 0 : index
    %0 = vector.load %arg1[%c0, %c0_0, %c0_1] : memref<1x8x256xbf16, #tpu.memory_space<vmem>>, vector<1x8x256xbf16>
    %1 = vector.shape_cast %0 : vector<1x8x256xbf16> to vector<8x256xbf16>
    %2 = arith.extf %1 : vector<8x256xbf16> to vector<8x256xf32>
    %c0_2 = arith.constant 0 : index
    %c0_3 = arith.constant 0 : index
    %3 = vector.load %arg2[%c0_2, %c0_3] : memref<8x1xf32, #tpu.memory_space<vmem>>, vector<8x1xf32>
    %4 = vector.broadcast %3 : vector<8x1xf32> to vector<8x256xf32>
    %5 = arith.mulf %2, %4 : vector<8x256xf32>
    %c0_4 = arith.constant 0 : index
    %c0_5 = arith.constant 0 : index
    %6 = vector.load %arg3[%c0_4, %c0_5] : memref<8x1xf32, #tpu.memory_space<vmem>>, vector<8x1xf32>
    %7 = vector.broadcast %6 : vector<8x1xf32> to vector<8x256xf32>
    %8 = arith.addf %5, %7 : vector<8x256xf32>
    %9 = arith.negf %8 : vector<8x256xf32>
    %10 = math.exp %9 : vector<8x256xf32>
    %cst = arith.constant 1.000000e+00 : f32
    %11 = vector.broadcast %cst : f32 to vector<8x256xf32>
    %12 = arith.addf %11, %10 : vector<8x256xf32>
    %13 = arith.divf %11, %12 : vector<8x256xf32>
    %cst_6 = arith.constant 0.000000e+00 : f32
    %14 = vector.broadcast %cst_6 : f32 to vector<8x256xf32>
    %c17_i32 = arith.constant 17 : i32
    %15 = tpu.dynamic_rotate %13 by %c17_i32 dim 1 : vector<8x256xf32>, i32 -> vector<8x256xf32>
    %c0_7 = arith.constant 0 : index
    %c0_8 = arith.constant 0 : index
    %c0_9 = arith.constant 0 : index
    %16 = vector.load %arg6[%c0_7, %c0_8, %c0_9] : memref<9x1x256xf32, #tpu.memory_space<vmem>>, vector<1x1x256xf32>
    %17 = vector.shape_cast %16 : vector<1x1x256xf32> to vector<1x256xf32>
    %18 = vector.broadcast %17 : vector<1x256xf32> to vector<8x256xf32>
    %19 = arith.mulf %15, %18 : vector<8x256xf32>
    %c0_10 = arith.constant 0 : index
    %c0_11 = arith.constant 0 : index
    %c0_12 = arith.constant 0 : index
    %20 = vector.load %arg4[%c0_10, %c0_11, %c0_12] : memref<9x8x8xbf16, #tpu.memory_space<vmem>>, vector<1x8x8xbf16>
    %21 = vector.shape_cast %20 : vector<1x8x8xbf16> to vector<8x8xbf16>
    %22 = arith.truncf %19 : vector<8x256xf32> to vector<8x256xbf16>
    %cst_13 = arith.constant dense<0.000000e+00> : vector<8x256xf32>
    %23 = tpu.matmul %21, %22, %cst_13 {dimension_numbers = #tpu.dot_dimension_numbers<[1], [0], [0], [1], [0, 0, 1, 1], [], []>} : vector<8x8xbf16>, vector<8x256xbf16>, vector<8x256xf32> -> vector<8x256xf32>
    %24 = arith.addf %14, %23 : vector<8x256xf32>
    %c16_i32 = arith.constant 16 : i32
    %25 = tpu.dynamic_rotate %13 by %c16_i32 dim 1 : vector<8x256xf32>, i32 -> vector<8x256xf32>
    %c1 = arith.constant 1 : index
    %c0_14 = arith.constant 0 : index
    %c0_15 = arith.constant 0 : index
    %26 = vector.load %arg6[%c1, %c0_14, %c0_15] : memref<9x1x256xf32, #tpu.memory_space<vmem>>, vector<1x1x256xf32>
    %27 = vector.shape_cast %26 : vector<1x1x256xf32> to vector<1x256xf32>
    %28 = vector.broadcast %27 : vector<1x256xf32> to vector<8x256xf32>
    %29 = arith.mulf %25, %28 : vector<8x256xf32>
    %c1_16 = arith.constant 1 : index
    %c0_17 = arith.constant 0 : index
    %c0_18 = arith.constant 0 : index
    %30 = vector.load %arg4[%c1_16, %c0_17, %c0_18] : memref<9x8x8xbf16, #tpu.memory_space<vmem>>, vector<1x8x8xbf16>
    %31 = vector.shape_cast %30 : vector<1x8x8xbf16> to vector<8x8xbf16>
    %32 = arith.truncf %29 : vector<8x256xf32> to vector<8x256xbf16>
    %cst_19 = arith.constant dense<0.000000e+00> : vector<8x256xf32>
    %33 = tpu.matmul %31, %32, %cst_19 {dimension_numbers = #tpu.dot_dimension_numbers<[1], [0], [0], [1], [0, 0, 1, 1], [], []>} : vector<8x8xbf16>, vector<8x256xbf16>, vector<8x256xf32> -> vector<8x256xf32>
    %34 = arith.addf %24, %33 : vector<8x256xf32>
    %c15_i32 = arith.constant 15 : i32
    %35 = tpu.dynamic_rotate %13 by %c15_i32 dim 1 : vector<8x256xf32>, i32 -> vector<8x256xf32>
    %c2 = arith.constant 2 : index
    %c0_20 = arith.constant 0 : index
    %c0_21 = arith.constant 0 : index
    %36 = vector.load %arg6[%c2, %c0_20, %c0_21] : memref<9x1x256xf32, #tpu.memory_space<vmem>>, vector<1x1x256xf32>
    %37 = vector.shape_cast %36 : vector<1x1x256xf32> to vector<1x256xf32>
    %38 = vector.broadcast %37 : vector<1x256xf32> to vector<8x256xf32>
    %39 = arith.mulf %35, %38 : vector<8x256xf32>
    %c2_22 = arith.constant 2 : index
    %c0_23 = arith.constant 0 : index
    %c0_24 = arith.constant 0 : index
    %40 = vector.load %arg4[%c2_22, %c0_23, %c0_24] : memref<9x8x8xbf16, #tpu.memory_space<vmem>>, vector<1x8x8xbf16>
    %41 = vector.shape_cast %40 : vector<1x8x8xbf16> to vector<8x8xbf16>
    %42 = arith.truncf %39 : vector<8x256xf32> to vector<8x256xbf16>
    %cst_25 = arith.constant dense<0.000000e+00> : vector<8x256xf32>
    %43 = tpu.matmul %41, %42, %cst_25 {dimension_numbers = #tpu.dot_dimension_numbers<[1], [0], [0], [1], [0, 0, 1, 1], [], []>} : vector<8x8xbf16>, vector<8x256xbf16>, vector<8x256xf32> -> vector<8x256xf32>
    %44 = arith.addf %34, %43 : vector<8x256xf32>
    %c1_i32 = arith.constant 1 : i32
    %45 = tpu.dynamic_rotate %13 by %c1_i32 dim 1 : vector<8x256xf32>, i32 -> vector<8x256xf32>
    %c3 = arith.constant 3 : index
    %c0_26 = arith.constant 0 : index
    %c0_27 = arith.constant 0 : index
    %46 = vector.load %arg6[%c3, %c0_26, %c0_27] : memref<9x1x256xf32, #tpu.memory_space<vmem>>, vector<1x1x256xf32>
    %47 = vector.shape_cast %46 : vector<1x1x256xf32> to vector<1x256xf32>
    %48 = vector.broadcast %47 : vector<1x256xf32> to vector<8x256xf32>
    %49 = arith.mulf %45, %48 : vector<8x256xf32>
    %c3_28 = arith.constant 3 : index
    %c0_29 = arith.constant 0 : index
    %c0_30 = arith.constant 0 : index
    %50 = vector.load %arg4[%c3_28, %c0_29, %c0_30] : memref<9x8x8xbf16, #tpu.memory_space<vmem>>, vector<1x8x8xbf16>
    %51 = vector.shape_cast %50 : vector<1x8x8xbf16> to vector<8x8xbf16>
    %52 = arith.truncf %49 : vector<8x256xf32> to vector<8x256xbf16>
    %cst_31 = arith.constant dense<0.000000e+00> : vector<8x256xf32>
    %53 = tpu.matmul %51, %52, %cst_31 {dimension_numbers = #tpu.dot_dimension_numbers<[1], [0], [0], [1], [0, 0, 1, 1], [], []>} : vector<8x8xbf16>, vector<8x256xbf16>, vector<8x256xf32> -> vector<8x256xf32>
    %54 = arith.addf %44, %53 : vector<8x256xf32>
    %c4 = arith.constant 4 : index
    %c0_32 = arith.constant 0 : index
    %c0_33 = arith.constant 0 : index
    %55 = vector.load %arg4[%c4, %c0_32, %c0_33] : memref<9x8x8xbf16, #tpu.memory_space<vmem>>, vector<1x8x8xbf16>
    %56 = vector.shape_cast %55 : vector<1x8x8xbf16> to vector<8x8xbf16>
    %57 = arith.truncf %13 : vector<8x256xf32> to vector<8x256xbf16>
    %cst_34 = arith.constant dense<0.000000e+00> : vector<8x256xf32>
    %58 = tpu.matmul %56, %57, %cst_34 {dimension_numbers = #tpu.dot_dimension_numbers<[1], [0], [0], [1], [0, 0, 1, 1], [], []>} : vector<8x8xbf16>, vector<8x256xbf16>, vector<8x256xf32> -> vector<8x256xf32>
    %59 = arith.addf %54, %58 : vector<8x256xf32>
    %c255_i32 = arith.constant 255 : i32
    %60 = tpu.dynamic_rotate %13 by %c255_i32 dim 1 : vector<8x256xf32>, i32 -> vector<8x256xf32>
    %c5 = arith.constant 5 : index
    %c0_35 = arith.constant 0 : index
    %c0_36 = arith.constant 0 : index
    %61 = vector.load %arg6[%c5, %c0_35, %c0_36] : memref<9x1x256xf32, #tpu.memory_space<vmem>>, vector<1x1x256xf32>
    %62 = vector.shape_cast %61 : vector<1x1x256xf32> to vector<1x256xf32>
    %63 = vector.broadcast %62 : vector<1x256xf32> to vector<8x256xf32>
    %64 = arith.mulf %60, %63 : vector<8x256xf32>
    %c5_37 = arith.constant 5 : index
    %c0_38 = arith.constant 0 : index
    %c0_39 = arith.constant 0 : index
    %65 = vector.load %arg4[%c5_37, %c0_38, %c0_39] : memref<9x8x8xbf16, #tpu.memory_space<vmem>>, vector<1x8x8xbf16>
    %66 = vector.shape_cast %65 : vector<1x8x8xbf16> to vector<8x8xbf16>
    %67 = arith.truncf %64 : vector<8x256xf32> to vector<8x256xbf16>
    %cst_40 = arith.constant dense<0.000000e+00> : vector<8x256xf32>
    %68 = tpu.matmul %66, %67, %cst_40 {dimension_numbers = #tpu.dot_dimension_numbers<[1], [0], [0], [1], [0, 0, 1, 1], [], []>} : vector<8x8xbf16>, vector<8x256xbf16>, vector<8x256xf32> -> vector<8x256xf32>
    %69 = arith.addf %59, %68 : vector<8x256xf32>
    %c241_i32 = arith.constant 241 : i32
    %70 = tpu.dynamic_rotate %13 by %c241_i32 dim 1 : vector<8x256xf32>, i32 -> vector<8x256xf32>
    %c6 = arith.constant 6 : index
    %c0_41 = arith.constant 0 : index
    %c0_42 = arith.constant 0 : index
    %71 = vector.load %arg6[%c6, %c0_41, %c0_42] : memref<9x1x256xf32, #tpu.memory_space<vmem>>, vector<1x1x256xf32>
    %72 = vector.shape_cast %71 : vector<1x1x256xf32> to vector<1x256xf32>
    %73 = vector.broadcast %72 : vector<1x256xf32> to vector<8x256xf32>
    %74 = arith.mulf %70, %73 : vector<8x256xf32>
    %c6_43 = arith.constant 6 : index
    %c0_44 = arith.constant 0 : index
    %c0_45 = arith.constant 0 : index
    %75 = vector.load %arg4[%c6_43, %c0_44, %c0_45] : memref<9x8x8xbf16, #tpu.memory_space<vmem>>, vector<1x8x8xbf16>
    %76 = vector.shape_cast %75 : vector<1x8x8xbf16> to vector<8x8xbf16>
    %77 = arith.truncf %74 : vector<8x256xf32> to vector<8x256xbf16>
    %cst_46 = arith.constant dense<0.000000e+00> : vector<8x256xf32>
    %78 = tpu.matmul %76, %77, %cst_46 {dimension_numbers = #tpu.dot_dimension_numbers<[1], [0], [0], [1], [0, 0, 1, 1], [], []>} : vector<8x8xbf16>, vector<8x256xbf16>, vector<8x256xf32> -> vector<8x256xf32>
    %79 = arith.addf %69, %78 : vector<8x256xf32>
    %c240_i32 = arith.constant 240 : i32
    %80 = tpu.dynamic_rotate %13 by %c240_i32 dim 1 : vector<8x256xf32>, i32 -> vector<8x256xf32>
    %c7 = arith.constant 7 : index
    %c0_47 = arith.constant 0 : index
    %c0_48 = arith.constant 0 : index
    %81 = vector.load %arg6[%c7, %c0_47, %c0_48] : memref<9x1x256xf32, #tpu.memory_space<vmem>>, vector<1x1x256xf32>
    %82 = vector.shape_cast %81 : vector<1x1x256xf32> to vector<1x256xf32>
    %83 = vector.broadcast %82 : vector<1x256xf32> to vector<8x256xf32>
    %84 = arith.mulf %80, %83 : vector<8x256xf32>
    %c7_49 = arith.constant 7 : index
    %c0_50 = arith.constant 0 : index
    %c0_51 = arith.constant 0 : index
    %85 = vector.load %arg4[%c7_49, %c0_50, %c0_51] : memref<9x8x8xbf16, #tpu.memory_space<vmem>>, vector<1x8x8xbf16>
    %86 = vector.shape_cast %85 : vector<1x8x8xbf16> to vector<8x8xbf16>
    %87 = arith.truncf %84 : vector<8x256xf32> to vector<8x256xbf16>
    %cst_52 = arith.constant dense<0.000000e+00> : vector<8x256xf32>
    %88 = tpu.matmul %86, %87, %cst_52 {dimension_numbers = #tpu.dot_dimension_numbers<[1], [0], [0], [1], [0, 0, 1, 1], [], []>} : vector<8x8xbf16>, vector<8x256xbf16>, vector<8x256xf32> -> vector<8x256xf32>
    %89 = arith.addf %79, %88 : vector<8x256xf32>
    %c239_i32 = arith.constant 239 : i32
    %90 = tpu.dynamic_rotate %13 by %c239_i32 dim 1 : vector<8x256xf32>, i32 -> vector<8x256xf32>
    %c8 = arith.constant 8 : index
    %c0_53 = arith.constant 0 : index
    %c0_54 = arith.constant 0 : index
    %91 = vector.load %arg6[%c8, %c0_53, %c0_54] : memref<9x1x256xf32, #tpu.memory_space<vmem>>, vector<1x1x256xf32>
    %92 = vector.shape_cast %91 : vector<1x1x256xf32> to vector<1x256xf32>
    %93 = vector.broadcast %92 : vector<1x256xf32> to vector<8x256xf32>
    %94 = arith.mulf %90, %93 : vector<8x256xf32>
    %c8_55 = arith.constant 8 : index
    %c0_56 = arith.constant 0 : index
    %c0_57 = arith.constant 0 : index
    %95 = vector.load %arg4[%c8_55, %c0_56, %c0_57] : memref<9x8x8xbf16, #tpu.memory_space<vmem>>, vector<1x8x8xbf16>
    %96 = vector.shape_cast %95 : vector<1x8x8xbf16> to vector<8x8xbf16>
    %97 = arith.truncf %94 : vector<8x256xf32> to vector<8x256xbf16>
    %cst_58 = arith.constant dense<0.000000e+00> : vector<8x256xf32>
    %98 = tpu.matmul %96, %97, %cst_58 {dimension_numbers = #tpu.dot_dimension_numbers<[1], [0], [0], [1], [0, 0, 1, 1], [], []>} : vector<8x8xbf16>, vector<8x256xbf16>, vector<8x256xf32> -> vector<8x256xf32>
    %99 = arith.addf %89, %98 : vector<8x256xf32>
    %c0_59 = arith.constant 0 : index
    %c0_60 = arith.constant 0 : index
    %100 = vector.load %arg5[%c0_59, %c0_60] : memref<8x1xf32, #tpu.memory_space<vmem>>, vector<8x1xf32>
    %101 = vector.broadcast %100 : vector<8x1xf32> to vector<8x256xf32>
    %102 = arith.addf %99, %101 : vector<8x256xf32>
    %c0_61 = arith.constant 0 : index
    %c0_62 = arith.constant 0 : index
    %c0_63 = arith.constant 0 : index
    %103 = vector.load %arg7[%c0_61, %c0_62, %c0_63] : memref<1x8x256xf32, #tpu.memory_space<vmem>>, vector<1x8x256xf32>
    %104 = vector.shape_cast %103 : vector<1x8x256xf32> to vector<8x256xf32>
    %105 = vector.shape_cast %102 : vector<8x256xf32> to vector<1x8x256xf32>
    tpu.vector_store %arg7[%c0_61, %c0_62, %c0_63], %105 {strides = array<i32>} : memref<1x8x256xf32, #tpu.memory_space<vmem>>, vector<1x8x256xf32>,
    return
  }
  func.func @transform_0(%arg0: i32) -> (i32, i32, i32) {
    %c0_i32 = arith.constant 0 : i32
    %c0_i32_0 = arith.constant 0 : i32
    %c0_i32_1 = arith.constant 0 : i32
    return %arg0, %c0_i32, %c0_i32_0 : i32, i32, i32
  }
  func.func @transform_1(%arg0: i32) -> (i32, i32) {
    %c0_i32 = arith.constant 0 : i32
    %c0_i32_0 = arith.constant 0 : i32
    %c0_i32_1 = arith.constant 0 : i32
    return %c0_i32, %c0_i32_0 : i32, i32
  }
  func.func @transform_2(%arg0: i32) -> (i32, i32) {
    %c0_i32 = arith.constant 0 : i32
    %c0_i32_0 = arith.constant 0 : i32
    %c0_i32_1 = arith.constant 0 : i32
    return %c0_i32, %c0_i32_0 : i32, i32
  }
  func.func @transform_3(%arg0: i32) -> (i32, i32, i32) {
    %c0_i32 = arith.constant 0 : i32
    %c0_i32_0 = arith.constant 0 : i32
    %c0_i32_1 = arith.constant 0 : i32
    %c0_i32_2 = arith.constant 0 : i32
    return %c0_i32, %c0_i32_0, %c0_i32_1 : i32, i32, i32
  }
  func.func @transform_4(%arg0: i32) -> (i32, i32) {
    %c0_i32 = arith.constant 0 : i32
    %c0_i32_0 = arith.constant 0 : i32
    %c0_i32_1 = arith.constant 0 : i32
    return %c0_i32, %c0_i32_0 : i32, i32
  }
  func.func @transform_5(%arg0: i32) -> (i32, i32, i32) {
    %c0_i32 = arith.constant 0 : i32
    %c0_i32_0 = arith.constant 0 : i32
    %c0_i32_1 = arith.constant 0 : i32
    %c0_i32_2 = arith.constant 0 : i32
    return %c0_i32, %c0_i32_0, %c0_i32_1 : i32, i32, i32
  }
  func.func @transform_6(%arg0: i32) -> (i32, i32, i32) {
    %c0_i32 = arith.constant 0 : i32
    %c0_i32_0 = arith.constant 0 : i32
    %c0_i32_1 = arith.constant 0 : i32
    return %arg0, %c0_i32, %c0_i32_0 : i32, i32, i32
  }
}

module attributes {stable_mosaic.version = 11 : i64} {
  func.func @kernel(%arg0: i32, %arg1: memref<1x4x256xf32, #tpu.memory_space<vmem>>, %arg2: memref<4x1xf32, #tpu.memory_space<vmem>>, %arg3: memref<4x1xf32, #tpu.memory_space<vmem>>, %arg4: memref<9x8x4xbf16, #tpu.memory_space<vmem>>, %arg5: memref<8x1xf32, #tpu.memory_space<vmem>>, %arg6: memref<9x1x256xf32, #tpu.memory_space<vmem>>, %arg7: memref<1x8x256xbf16, #tpu.memory_space<vmem>>, %arg8: memref<1x8x1xf32, #tpu.memory_space<vmem>>, %arg9: memref<1x8x1xf32, #tpu.memory_space<vmem>>) attributes {dimension_semantics = [#tpu.dimension_semantics<parallel>], iteration_bounds = array<i64: 2>, scalar_prefetch = 0 : i64, scratch_operands = 0 : i64, tpu.core_type = #tpu.core_type<tc>, window_params = [{transform_indices = @transform_0, window_bounds = array<i64: 1, 4, 256>}, {pipeline_mode = #tpu.pipeline_mode<synchronous>, transform_indices = @transform_1, window_bounds = array<i64: 4, 1>}, {pipeline_mode = #tpu.pipeline_mode<synchronous>, transform_indices = @transform_2, window_bounds = array<i64: 4, 1>}, {pipeline_mode = #tpu.pipeline_mode<synchronous>, transform_indices = @transform_3, window_bounds = array<i64: 9, 8, 4>}, {pipeline_mode = #tpu.pipeline_mode<synchronous>, transform_indices = @transform_4, window_bounds = array<i64: 8, 1>}, {pipeline_mode = #tpu.pipeline_mode<synchronous>, transform_indices = @transform_5, window_bounds = array<i64: 9, 1, 256>}, {transform_indices = @transform_6, window_bounds = array<i64: 1, 8, 256>}, {transform_indices = @transform_7, window_bounds = array<i64: 1, 8, 1>}, {transform_indices = @transform_8, window_bounds = array<i64: 1, 8, 1>}]} {
    %c0 = arith.constant 0 : index
    %c0_0 = arith.constant 0 : index
    %c0_1 = arith.constant 0 : index
    %0 = vector.load %arg1[%c0, %c0_0, %c0_1] : memref<1x4x256xf32, #tpu.memory_space<vmem>>, vector<1x4x256xf32>
    %1 = vector.shape_cast %0 : vector<1x4x256xf32> to vector<4x256xf32>
    %c0_2 = arith.constant 0 : index
    %c0_3 = arith.constant 0 : index
    %2 = vector.load %arg2[%c0_2, %c0_3] : memref<4x1xf32, #tpu.memory_space<vmem>>, vector<4x1xf32>
    %3 = vector.broadcast %2 : vector<4x1xf32> to vector<4x256xf32>
    %4 = arith.mulf %1, %3 : vector<4x256xf32>
    %c0_4 = arith.constant 0 : index
    %c0_5 = arith.constant 0 : index
    %5 = vector.load %arg3[%c0_4, %c0_5] : memref<4x1xf32, #tpu.memory_space<vmem>>, vector<4x1xf32>
    %6 = vector.broadcast %5 : vector<4x1xf32> to vector<4x256xf32>
    %7 = arith.addf %4, %6 : vector<4x256xf32>
    %8 = arith.negf %7 : vector<4x256xf32>
    %9 = math.exp %8 : vector<4x256xf32>
    %cst = arith.constant 1.000000e+00 : f32
    %10 = vector.broadcast %cst : f32 to vector<4x256xf32>
    %11 = arith.addf %10, %9 : vector<4x256xf32>
    %12 = arith.divf %10, %11 : vector<4x256xf32>
    %cst_6 = arith.constant 0.000000e+00 : f32
    %13 = vector.broadcast %cst_6 : f32 to vector<8x256xf32>
    %c17_i32 = arith.constant 17 : i32
    %14 = tpu.dynamic_rotate %12 by %c17_i32 dim 1 : vector<4x256xf32>, i32 -> vector<4x256xf32>
    %c0_7 = arith.constant 0 : index
    %c0_8 = arith.constant 0 : index
    %c0_9 = arith.constant 0 : index
    %15 = vector.load %arg6[%c0_7, %c0_8, %c0_9] : memref<9x1x256xf32, #tpu.memory_space<vmem>>, vector<1x1x256xf32>
    %16 = vector.shape_cast %15 : vector<1x1x256xf32> to vector<1x256xf32>
    %17 = vector.broadcast %16 : vector<1x256xf32> to vector<4x256xf32>
    %18 = arith.mulf %14, %17 : vector<4x256xf32>
    %c0_10 = arith.constant 0 : index
    %c0_11 = arith.constant 0 : index
    %c0_12 = arith.constant 0 : index
    %19 = vector.load %arg4[%c0_10, %c0_11, %c0_12] : memref<9x8x4xbf16, #tpu.memory_space<vmem>>, vector<1x8x4xbf16>
    %20 = vector.shape_cast %19 : vector<1x8x4xbf16> to vector<8x4xbf16>
    %21 = arith.truncf %18 : vector<4x256xf32> to vector<4x256xbf16>
    %cst_13 = arith.constant dense<0.000000e+00> : vector<8x256xf32>
    %22 = tpu.matmul %20, %21, %cst_13 {dimension_numbers = #tpu.dot_dimension_numbers<[1], [0], [0], [1], [0, 0, 1, 1], [], []>} : vector<8x4xbf16>, vector<4x256xbf16>, vector<8x256xf32> -> vector<8x256xf32>
    %23 = arith.addf %13, %22 : vector<8x256xf32>
    %c16_i32 = arith.constant 16 : i32
    %24 = tpu.dynamic_rotate %12 by %c16_i32 dim 1 : vector<4x256xf32>, i32 -> vector<4x256xf32>
    %c1 = arith.constant 1 : index
    %c0_14 = arith.constant 0 : index
    %c0_15 = arith.constant 0 : index
    %25 = vector.load %arg6[%c1, %c0_14, %c0_15] : memref<9x1x256xf32, #tpu.memory_space<vmem>>, vector<1x1x256xf32>
    %26 = vector.shape_cast %25 : vector<1x1x256xf32> to vector<1x256xf32>
    %27 = vector.broadcast %26 : vector<1x256xf32> to vector<4x256xf32>
    %28 = arith.mulf %24, %27 : vector<4x256xf32>
    %c1_16 = arith.constant 1 : index
    %c0_17 = arith.constant 0 : index
    %c0_18 = arith.constant 0 : index
    %29 = vector.load %arg4[%c1_16, %c0_17, %c0_18] : memref<9x8x4xbf16, #tpu.memory_space<vmem>>, vector<1x8x4xbf16>
    %30 = vector.shape_cast %29 : vector<1x8x4xbf16> to vector<8x4xbf16>
    %31 = arith.truncf %28 : vector<4x256xf32> to vector<4x256xbf16>
    %cst_19 = arith.constant dense<0.000000e+00> : vector<8x256xf32>
    %32 = tpu.matmul %30, %31, %cst_19 {dimension_numbers = #tpu.dot_dimension_numbers<[1], [0], [0], [1], [0, 0, 1, 1], [], []>} : vector<8x4xbf16>, vector<4x256xbf16>, vector<8x256xf32> -> vector<8x256xf32>
    %33 = arith.addf %23, %32 : vector<8x256xf32>
    %c15_i32 = arith.constant 15 : i32
    %34 = tpu.dynamic_rotate %12 by %c15_i32 dim 1 : vector<4x256xf32>, i32 -> vector<4x256xf32>
    %c2 = arith.constant 2 : index
    %c0_20 = arith.constant 0 : index
    %c0_21 = arith.constant 0 : index
    %35 = vector.load %arg6[%c2, %c0_20, %c0_21] : memref<9x1x256xf32, #tpu.memory_space<vmem>>, vector<1x1x256xf32>
    %36 = vector.shape_cast %35 : vector<1x1x256xf32> to vector<1x256xf32>
    %37 = vector.broadcast %36 : vector<1x256xf32> to vector<4x256xf32>
    %38 = arith.mulf %34, %37 : vector<4x256xf32>
    %c2_22 = arith.constant 2 : index
    %c0_23 = arith.constant 0 : index
    %c0_24 = arith.constant 0 : index
    %39 = vector.load %arg4[%c2_22, %c0_23, %c0_24] : memref<9x8x4xbf16, #tpu.memory_space<vmem>>, vector<1x8x4xbf16>
    %40 = vector.shape_cast %39 : vector<1x8x4xbf16> to vector<8x4xbf16>
    %41 = arith.truncf %38 : vector<4x256xf32> to vector<4x256xbf16>
    %cst_25 = arith.constant dense<0.000000e+00> : vector<8x256xf32>
    %42 = tpu.matmul %40, %41, %cst_25 {dimension_numbers = #tpu.dot_dimension_numbers<[1], [0], [0], [1], [0, 0, 1, 1], [], []>} : vector<8x4xbf16>, vector<4x256xbf16>, vector<8x256xf32> -> vector<8x256xf32>
    %43 = arith.addf %33, %42 : vector<8x256xf32>
    %c1_i32 = arith.constant 1 : i32
    %44 = tpu.dynamic_rotate %12 by %c1_i32 dim 1 : vector<4x256xf32>, i32 -> vector<4x256xf32>
    %c3 = arith.constant 3 : index
    %c0_26 = arith.constant 0 : index
    %c0_27 = arith.constant 0 : index
    %45 = vector.load %arg6[%c3, %c0_26, %c0_27] : memref<9x1x256xf32, #tpu.memory_space<vmem>>, vector<1x1x256xf32>
    %46 = vector.shape_cast %45 : vector<1x1x256xf32> to vector<1x256xf32>
    %47 = vector.broadcast %46 : vector<1x256xf32> to vector<4x256xf32>
    %48 = arith.mulf %44, %47 : vector<4x256xf32>
    %c3_28 = arith.constant 3 : index
    %c0_29 = arith.constant 0 : index
    %c0_30 = arith.constant 0 : index
    %49 = vector.load %arg4[%c3_28, %c0_29, %c0_30] : memref<9x8x4xbf16, #tpu.memory_space<vmem>>, vector<1x8x4xbf16>
    %50 = vector.shape_cast %49 : vector<1x8x4xbf16> to vector<8x4xbf16>
    %51 = arith.truncf %48 : vector<4x256xf32> to vector<4x256xbf16>
    %cst_31 = arith.constant dense<0.000000e+00> : vector<8x256xf32>
    %52 = tpu.matmul %50, %51, %cst_31 {dimension_numbers = #tpu.dot_dimension_numbers<[1], [0], [0], [1], [0, 0, 1, 1], [], []>} : vector<8x4xbf16>, vector<4x256xbf16>, vector<8x256xf32> -> vector<8x256xf32>
    %53 = arith.addf %43, %52 : vector<8x256xf32>
    %c4 = arith.constant 4 : index
    %c0_32 = arith.constant 0 : index
    %c0_33 = arith.constant 0 : index
    %54 = vector.load %arg4[%c4, %c0_32, %c0_33] : memref<9x8x4xbf16, #tpu.memory_space<vmem>>, vector<1x8x4xbf16>
    %55 = vector.shape_cast %54 : vector<1x8x4xbf16> to vector<8x4xbf16>
    %56 = arith.truncf %12 : vector<4x256xf32> to vector<4x256xbf16>
    %cst_34 = arith.constant dense<0.000000e+00> : vector<8x256xf32>
    %57 = tpu.matmul %55, %56, %cst_34 {dimension_numbers = #tpu.dot_dimension_numbers<[1], [0], [0], [1], [0, 0, 1, 1], [], []>} : vector<8x4xbf16>, vector<4x256xbf16>, vector<8x256xf32> -> vector<8x256xf32>
    %58 = arith.addf %53, %57 : vector<8x256xf32>
    %c255_i32 = arith.constant 255 : i32
    %59 = tpu.dynamic_rotate %12 by %c255_i32 dim 1 : vector<4x256xf32>, i32 -> vector<4x256xf32>
    %c5 = arith.constant 5 : index
    %c0_35 = arith.constant 0 : index
    %c0_36 = arith.constant 0 : index
    %60 = vector.load %arg6[%c5, %c0_35, %c0_36] : memref<9x1x256xf32, #tpu.memory_space<vmem>>, vector<1x1x256xf32>
    %61 = vector.shape_cast %60 : vector<1x1x256xf32> to vector<1x256xf32>
    %62 = vector.broadcast %61 : vector<1x256xf32> to vector<4x256xf32>
    %63 = arith.mulf %59, %62 : vector<4x256xf32>
    %c5_37 = arith.constant 5 : index
    %c0_38 = arith.constant 0 : index
    %c0_39 = arith.constant 0 : index
    %64 = vector.load %arg4[%c5_37, %c0_38, %c0_39] : memref<9x8x4xbf16, #tpu.memory_space<vmem>>, vector<1x8x4xbf16>
    %65 = vector.shape_cast %64 : vector<1x8x4xbf16> to vector<8x4xbf16>
    %66 = arith.truncf %63 : vector<4x256xf32> to vector<4x256xbf16>
    %cst_40 = arith.constant dense<0.000000e+00> : vector<8x256xf32>
    %67 = tpu.matmul %65, %66, %cst_40 {dimension_numbers = #tpu.dot_dimension_numbers<[1], [0], [0], [1], [0, 0, 1, 1], [], []>} : vector<8x4xbf16>, vector<4x256xbf16>, vector<8x256xf32> -> vector<8x256xf32>
    %68 = arith.addf %58, %67 : vector<8x256xf32>
    %c241_i32 = arith.constant 241 : i32
    %69 = tpu.dynamic_rotate %12 by %c241_i32 dim 1 : vector<4x256xf32>, i32 -> vector<4x256xf32>
    %c6 = arith.constant 6 : index
    %c0_41 = arith.constant 0 : index
    %c0_42 = arith.constant 0 : index
    %70 = vector.load %arg6[%c6, %c0_41, %c0_42] : memref<9x1x256xf32, #tpu.memory_space<vmem>>, vector<1x1x256xf32>
    %71 = vector.shape_cast %70 : vector<1x1x256xf32> to vector<1x256xf32>
    %72 = vector.broadcast %71 : vector<1x256xf32> to vector<4x256xf32>
    %73 = arith.mulf %69, %72 : vector<4x256xf32>
    %c6_43 = arith.constant 6 : index
    %c0_44 = arith.constant 0 : index
    %c0_45 = arith.constant 0 : index
    %74 = vector.load %arg4[%c6_43, %c0_44, %c0_45] : memref<9x8x4xbf16, #tpu.memory_space<vmem>>, vector<1x8x4xbf16>
    %75 = vector.shape_cast %74 : vector<1x8x4xbf16> to vector<8x4xbf16>
    %76 = arith.truncf %73 : vector<4x256xf32> to vector<4x256xbf16>
    %cst_46 = arith.constant dense<0.000000e+00> : vector<8x256xf32>
    %77 = tpu.matmul %75, %76, %cst_46 {dimension_numbers = #tpu.dot_dimension_numbers<[1], [0], [0], [1], [0, 0, 1, 1], [], []>} : vector<8x4xbf16>, vector<4x256xbf16>, vector<8x256xf32> -> vector<8x256xf32>
    %78 = arith.addf %68, %77 : vector<8x256xf32>
    %c240_i32 = arith.constant 240 : i32
    %79 = tpu.dynamic_rotate %12 by %c240_i32 dim 1 : vector<4x256xf32>, i32 -> vector<4x256xf32>
    %c7 = arith.constant 7 : index
    %c0_47 = arith.constant 0 : index
    %c0_48 = arith.constant 0 : index
    %80 = vector.load %arg6[%c7, %c0_47, %c0_48] : memref<9x1x256xf32, #tpu.memory_space<vmem>>, vector<1x1x256xf32>
    %81 = vector.shape_cast %80 : vector<1x1x256xf32> to vector<1x256xf32>
    %82 = vector.broadcast %81 : vector<1x256xf32> to vector<4x256xf32>
    %83 = arith.mulf %79, %82 : vector<4x256xf32>
    %c7_49 = arith.constant 7 : index
    %c0_50 = arith.constant 0 : index
    %c0_51 = arith.constant 0 : index
    %84 = vector.load %arg4[%c7_49, %c0_50, %c0_51] : memref<9x8x4xbf16, #tpu.memory_space<vmem>>, vector<1x8x4xbf16>
    %85 = vector.shape_cast %84 : vector<1x8x4xbf16> to vector<8x4xbf16>
    %86 = arith.truncf %83 : vector<4x256xf32> to vector<4x256xbf16>
    %cst_52 = arith.constant dense<0.000000e+00> : vector<8x256xf32>
    %87 = tpu.matmul %85, %86, %cst_52 {dimension_numbers = #tpu.dot_dimension_numbers<[1], [0], [0], [1], [0, 0, 1, 1], [], []>} : vector<8x4xbf16>, vector<4x256xbf16>, vector<8x256xf32> -> vector<8x256xf32>
    %88 = arith.addf %78, %87 : vector<8x256xf32>
    %c239_i32 = arith.constant 239 : i32
    %89 = tpu.dynamic_rotate %12 by %c239_i32 dim 1 : vector<4x256xf32>, i32 -> vector<4x256xf32>
    %c8 = arith.constant 8 : index
    %c0_53 = arith.constant 0 : index
    %c0_54 = arith.constant 0 : index
    %90 = vector.load %arg6[%c8, %c0_53, %c0_54] : memref<9x1x256xf32, #tpu.memory_space<vmem>>, vector<1x1x256xf32>
    %91 = vector.shape_cast %90 : vector<1x1x256xf32> to vector<1x256xf32>
    %92 = vector.broadcast %91 : vector<1x256xf32> to vector<4x256xf32>
    %93 = arith.mulf %89, %92 : vector<4x256xf32>
    %c8_55 = arith.constant 8 : index
    %c0_56 = arith.constant 0 : index
    %c0_57 = arith.constant 0 : index
    %94 = vector.load %arg4[%c8_55, %c0_56, %c0_57] : memref<9x8x4xbf16, #tpu.memory_space<vmem>>, vector<1x8x4xbf16>
    %95 = vector.shape_cast %94 : vector<1x8x4xbf16> to vector<8x4xbf16>
    %96 = arith.truncf %93 : vector<4x256xf32> to vector<4x256xbf16>
    %cst_58 = arith.constant dense<0.000000e+00> : vector<8x256xf32>
    %97 = tpu.matmul %95, %96, %cst_58 {dimension_numbers = #tpu.dot_dimension_numbers<[1], [0], [0], [1], [0, 0, 1, 1], [], []>} : vector<8x4xbf16>, vector<4x256xbf16>, vector<8x256xf32> -> vector<8x256xf32>
    %98 = arith.addf %88, %97 : vector<8x256xf32>
    %c0_59 = arith.constant 0 : index
    %c0_60 = arith.constant 0 : index
    %99 = vector.load %arg5[%c0_59, %c0_60] : memref<8x1xf32, #tpu.memory_space<vmem>>, vector<8x1xf32>
    %100 = vector.broadcast %99 : vector<8x1xf32> to vector<8x256xf32>
    %101 = arith.addf %98, %100 : vector<8x256xf32>
    %102 = arith.truncf %101 : vector<8x256xf32> to vector<8x256xbf16>
    %c0_61 = arith.constant 0 : index
    %c0_62 = arith.constant 0 : index
    %c0_63 = arith.constant 0 : index
    %103 = vector.load %arg7[%c0_61, %c0_62, %c0_63] : memref<1x8x256xbf16, #tpu.memory_space<vmem>>, vector<1x8x256xbf16>
    %104 = vector.shape_cast %103 : vector<1x8x256xbf16> to vector<8x256xbf16>
    %105 = vector.shape_cast %102 : vector<8x256xbf16> to vector<1x8x256xbf16>
    tpu.vector_store %arg7[%c0_61, %c0_62, %c0_63], %105 {strides = array<i32>} : memref<1x8x256xbf16, #tpu.memory_space<vmem>>, vector<1x8x256xbf16>,
    %106 = arith.extf %102 : vector<8x256xbf16> to vector<8x256xf32>
    %cst_64 = arith.constant dense<0.000000e+00> : vector<8xf32>
    %107 = vector.multi_reduction <add>, %106, %cst_64 [1] : vector<8x256xf32> to vector<8xf32>
    %108 = vector.shape_cast %107 : vector<8xf32> to vector<8x1xf32>
    %c0_65 = arith.constant 0 : index
    %c0_66 = arith.constant 0 : index
    %c0_67 = arith.constant 0 : index
    %109 = vector.load %arg8[%c0_65, %c0_66, %c0_67] : memref<1x8x1xf32, #tpu.memory_space<vmem>>, vector<1x8x1xf32>
    %110 = vector.shape_cast %109 : vector<1x8x1xf32> to vector<8x1xf32>
    %111 = vector.shape_cast %108 : vector<8x1xf32> to vector<1x8x1xf32>
    tpu.vector_store %arg8[%c0_65, %c0_66, %c0_67], %111 {strides = array<i32>} : memref<1x8x1xf32, #tpu.memory_space<vmem>>, vector<1x8x1xf32>,
    %112 = arith.mulf %106, %106 : vector<8x256xf32>
    %cst_68 = arith.constant dense<0.000000e+00> : vector<8xf32>
    %113 = vector.multi_reduction <add>, %112, %cst_68 [1] : vector<8x256xf32> to vector<8xf32>
    %114 = vector.shape_cast %113 : vector<8xf32> to vector<8x1xf32>
    %c0_69 = arith.constant 0 : index
    %c0_70 = arith.constant 0 : index
    %c0_71 = arith.constant 0 : index
    %115 = vector.load %arg9[%c0_69, %c0_70, %c0_71] : memref<1x8x1xf32, #tpu.memory_space<vmem>>, vector<1x8x1xf32>
    %116 = vector.shape_cast %115 : vector<1x8x1xf32> to vector<8x1xf32>
    %117 = vector.shape_cast %114 : vector<8x1xf32> to vector<1x8x1xf32>
    tpu.vector_store %arg9[%c0_69, %c0_70, %c0_71], %117 {strides = array<i32>} : memref<1x8x1xf32, #tpu.memory_space<vmem>>, vector<1x8x1xf32>,
    return
  }
  func.func @transform_0(%arg0: i32) -> (i32, i32, i32) {
    %c0_i32 = arith.constant 0 : i32
    %c0_i32_0 = arith.constant 0 : i32
    %c0_i32_1 = arith.constant 0 : i32
    return %arg0, %c0_i32, %c0_i32_0 : i32, i32, i32
  }
  func.func @transform_1(%arg0: i32) -> (i32, i32) {
    %c0_i32 = arith.constant 0 : i32
    %c0_i32_0 = arith.constant 0 : i32
    %c0_i32_1 = arith.constant 0 : i32
    return %c0_i32, %c0_i32_0 : i32, i32
  }
  func.func @transform_2(%arg0: i32) -> (i32, i32) {
    %c0_i32 = arith.constant 0 : i32
    %c0_i32_0 = arith.constant 0 : i32
    %c0_i32_1 = arith.constant 0 : i32
    return %c0_i32, %c0_i32_0 : i32, i32
  }
  func.func @transform_3(%arg0: i32) -> (i32, i32, i32) {
    %c0_i32 = arith.constant 0 : i32
    %c0_i32_0 = arith.constant 0 : i32
    %c0_i32_1 = arith.constant 0 : i32
    %c0_i32_2 = arith.constant 0 : i32
    return %c0_i32, %c0_i32_0, %c0_i32_1 : i32, i32, i32
  }
  func.func @transform_4(%arg0: i32) -> (i32, i32) {
    %c0_i32 = arith.constant 0 : i32
    %c0_i32_0 = arith.constant 0 : i32
    %c0_i32_1 = arith.constant 0 : i32
    return %c0_i32, %c0_i32_0 : i32, i32
  }
  func.func @transform_5(%arg0: i32) -> (i32, i32, i32) {
    %c0_i32 = arith.constant 0 : i32
    %c0_i32_0 = arith.constant 0 : i32
    %c0_i32_1 = arith.constant 0 : i32
    %c0_i32_2 = arith.constant 0 : i32
    return %c0_i32, %c0_i32_0, %c0_i32_1 : i32, i32, i32
  }
  func.func @transform_6(%arg0: i32) -> (i32, i32, i32) {
    %c0_i32 = arith.constant 0 : i32
    %c0_i32_0 = arith.constant 0 : i32
    %c0_i32_1 = arith.constant 0 : i32
    return %arg0, %c0_i32, %c0_i32_0 : i32, i32, i32
  }
  func.func @transform_7(%arg0: i32) -> (i32, i32, i32) {
    %c0_i32 = arith.constant 0 : i32
    %c0_i32_0 = arith.constant 0 : i32
    %c0_i32_1 = arith.constant 0 : i32
    return %arg0, %c0_i32, %c0_i32_0 : i32, i32, i32
  }
  func.func @transform_8(%arg0: i32) -> (i32, i32, i32) {
    %c0_i32 = arith.constant 0 : i32
    %c0_i32_0 = arith.constant 0 : i32
    %c0_i32_1 = arith.constant 0 : i32
    return %arg0, %c0_i32, %c0_i32_0 : i32, i32, i32
  }
}

</mosaic_0001>

<llo_original>
// kernel: continus_paralle_conv.2
$region0: #{continus_paralle_conv.2}
  #allocation0 [shape = 'u32[]', space=smem, size = 0x4, offset = 0x4, fixed_abs, tag = 'smem constant byte address 0x4 - core index']
  #allocation1 [shape = 'u32[144,128]{1,0:T(1,128)}', space=vmem, size = 0x12000, scoped, tag = 'internal scratch']
  %s0 = inlined_call_operand.vmem [shape: f32[2,4,256], index: 0, kind: input, shape index: {}]
  %s1 = inlined_call_operand.vmem [shape: f32[4,1], index: 1, kind: input, shape index: {}]
  %s2 = inlined_call_operand.vmem [shape: f32[4,1], index: 2, kind: input, shape index: {}]
  %s3 = inlined_call_operand.vmem [shape: bf16[9,8,4], index: 3, kind: input, shape index: {}]
  %s4 = inlined_call_operand.vmem [shape: f32[8,1], index: 4, kind: input, shape index: {}]
  %s5 = inlined_call_operand.vmem [shape: f32[9,1,256], index: 5, kind: input, shape index: {}]
  %s6 = inlined_call_operand.vmem [shape: bf16[2,8,256], index: 6, kind: output, shape index: {0}]
  %s7 = inlined_call_operand.vmem [shape: f32[2,8,1], index: 7, kind: output, shape index: {1}]
  %s8 = inlined_call_operand.vmem [shape: f32[2,8,1], index: 8, kind: output, shape index: {2}]
  %9 = xla_tuple %s6, %s7, %s8
  %s10 = sld [smem:[#allocation0]]
  $region73: #{continus_paralle_conv.2} parent=0
    _
  %s12 = ssub.s32 1, %s10
  %s13 = scalar_select 0, %s12, %s10
  loop: start=0, step=1, limit=4
  $region2: #{continus_paralle_conv.2} parent=0 // loop_pre_header
    _
  $region3: #{continus_paralle_conv.2} parent=0 // loop_header
    %s15 = sphi 0, %s19
    %p16 = scmp.ge.s32.totalorder %s15, 4
    %s25 = sphi 0, %s27
    %s28 = sphi 0, %s25
    %s29 = sphi 0, %s28
    %s45 = sphi 0, %s29
    %s49 = sphi 0, %s49
    %s51 = sphi 0, %s49
    %s52 = sphi 0, %s51
    %s66 = sphi 0, %s52
    %s70 = sphi 0, %s70
    %s72 = sphi 0, %s70
    %s73 = sphi 0, %s72
    %s87 = sphi 0, %s73
    %s91 = sphi 0, %s91
    %s93 = sphi 0, %s91
    %s94 = sphi 0, %s93
    %s108 = sphi 0, %s94
    %s112 = sphi 0, %s112
    %s114 = sphi 0, %s112
    %s115 = sphi 0, %s114
    %s129 = sphi 0, %s115
    %s133 = sphi 0, %s133
    %s135 = sphi 0, %s133
    %s136 = sphi 0, %s135
    %s150 = sphi 0, %s136
    %s156 = sphi 0, %s158
    %s159 = sphi 0, %s156
    %s160 = sphi 0, %s159
    %s176 = sphi 0, %s160
    %s182 = sphi 0, %s184
    %s185 = sphi 0, %s182
    %s186 = sphi 0, %s185
    %s202 = sphi 0, %s186
    %s208 = sphi 0, %s210
    %s211 = sphi 0, %s208
    %s212 = sphi 0, %s211
    %s228 = sphi 0, %s212
  $region4: #{continus_paralle_conv.2} parent=0 // loop_header_branch
    %18 = sbr.rel (%p16) target = $region8
  $region5: #{continus_paralle_conv.2} parent=0 // loop_body
    %s20 = ssub.s32 %s15, 1
    %s21 = ssub.s32 %s15, 2
    %s22 = sadd.s32 %s15, 1
    %s23 = ssub.s32 %s15, %s22
    %p24 = scmp.eq.s32.totalorder %s23, 0
    %s26 = sadd.s32 %s25, 1
    %s27 = scalar_select %p24, %s25, %s26
    %p30 = pneg %p24
    %p31 = scmp.eq.s32.totalorder %s15, 1
    %p32 = por %p30, %p31
    %p33 = scmp.ne.s32.totalorder %s25, %s28
    %p34 = scmp.eq.s32.totalorder %s15, 0
    %p35 = por %p33, %p34
    %p36 = scmp.ne.s32.totalorder %s25, %s28
    %p37 = scmp.eq.s32.totalorder %s20, 1
    %p38 = por %p36, %p37
    %p39 = scmp.ne.s32.totalorder %s28, %s29
    %p40 = scmp.eq.s32.totalorder %s20, 0
    %p41 = por %p39, %p40
    %p42 = scmp.ne.s32.totalorder %s28, %s29
    %p43 = scmp.eq.s32.totalorder %s21, 1
    %p44 = por %p42, %p43
    %p46 = scmp.ne.s32.totalorder %s29, %s45
    %p47 = scmp.eq.s32.totalorder %s21, 0
    %p48 = por %p46, %p47
    %s50 = sadd.s32 %s49, 1
    %p53 = scmp.eq.s32.totalorder %s15, 1
    %p54 = scmp.ne.s32.totalorder %s49, %s51
    %p55 = scmp.eq.s32.totalorder %s15, 0
    %p56 = por %p54, %p55
    %p57 = scmp.ne.s32.totalorder %s49, %s51
    %p58 = scmp.eq.s32.totalorder %s20, 1
    %p59 = por %p57, %p58
    %p60 = scmp.ne.s32.totalorder %s51, %s52
    %p61 = scmp.eq.s32.totalorder %s20, 0
    %p62 = por %p60, %p61
    %p63 = scmp.ne.s32.totalorder %s51, %s52
    %p64 = scmp.eq.s32.totalorder %s21, 1
    %p65 = por %p63, %p64
    %p67 = scmp.ne.s32.totalorder %s52, %s66
    %p68 = scmp.eq.s32.totalorder %s21, 0
    %p69 = por %p67, %p68
    %s71 = sadd.s32 %s70, 1
    %p74 = scmp.eq.s32.totalorder %s15, 1
    %p75 = scmp.ne.s32.totalorder %s70, %s72
    %p76 = scmp.eq.s32.totalorder %s15, 0
    %p77 = por %p75, %p76
    %p78 = scmp.ne.s32.totalorder %s70, %s72
    %p79 = scmp.eq.s32.totalorder %s20, 1
    %p80 = por %p78, %p79
    %p81 = scmp.ne.s32.totalorder %s72, %s73
    %p82 = scmp.eq.s32.totalorder %s20, 0
    %p83 = por %p81, %p82
    %p84 = scmp.ne.s32.totalorder %s72, %s73
    %p85 = scmp.eq.s32.totalorder %s21, 1
    %p86 = por %p84, %p85
    %p88 = scmp.ne.s32.totalorder %s73, %s87
    %p89 = scmp.eq.s32.totalorder %s21, 0
    %p90 = por %p88, %p89
    %s92 = sadd.s32 %s91, 1
    %p95 = scmp.eq.s32.totalorder %s15, 1
    %p96 = scmp.ne.s32.totalorder %s91, %s93
    %p97 = scmp.eq.s32.totalorder %s15, 0
    %p98 = por %p96, %p97
    %p99 = scmp.ne.s32.totalorder %s91, %s93
    %p100 = scmp.eq.s32.totalorder %s20, 1
    %p101 = por %p99, %p100
    %p102 = scmp.ne.s32.totalorder %s93, %s94
    %p103 = scmp.eq.s32.totalorder %s20, 0
    %p104 = por %p102, %p103
    %p105 = scmp.ne.s32.totalorder %s93, %s94
    %p106 = scmp.eq.s32.totalorder %s21, 1
    %p107 = por %p105, %p106
    %p109 = scmp.ne.s32.totalorder %s94, %s108
    %p110 = scmp.eq.s32.totalorder %s21, 0
    %p111 = por %p109, %p110
    %s113 = sadd.s32 %s112, 1
    %p116 = scmp.eq.s32.totalorder %s15, 1
    %p117 = scmp.ne.s32.totalorder %s112, %s114
    %p118 = scmp.eq.s32.totalorder %s15, 0
    %p119 = por %p117, %p118
    %p120 = scmp.ne.s32.totalorder %s112, %s114
    %p121 = scmp.eq.s32.totalorder %s20, 1
    %p122 = por %p120, %p121
    %p123 = scmp.ne.s32.totalorder %s114, %s115
    %p124 = scmp.eq.s32.totalorder %s20, 0
    %p125 = por %p123, %p124
    %p126 = scmp.ne.s32.totalorder %s114, %s115
    %p127 = scmp.eq.s32.totalorder %s21, 1
    %p128 = por %p126, %p127
    %p130 = scmp.ne.s32.totalorder %s115, %s129
    %p131 = scmp.eq.s32.totalorder %s21, 0
    %p132 = por %p130, %p131
    %s134 = sadd.s32 %s133, 1
    %p137 = scmp.eq.s32.totalorder %s15, 1
    %p138 = scmp.ne.s32.totalorder %s133, %s135
    %p139 = scmp.eq.s32.totalorder %s15, 0
    %p140 = por %p138, %p139
    %p141 = scmp.ne.s32.totalorder %s133, %s135
    %p142 = scmp.eq.s32.totalorder %s20, 1
    %p143 = por %p141, %p142
    %p144 = scmp.ne.s32.totalorder %s135, %s136
    %p145 = scmp.eq.s32.totalorder %s20, 0
    %p146 = por %p144, %p145
    %p147 = scmp.ne.s32.totalorder %s135, %s136
    %p148 = scmp.eq.s32.totalorder %s21, 1
    %p149 = por %p147, %p148
    %p151 = scmp.ne.s32.totalorder %s136, %s150
    %p152 = scmp.eq.s32.totalorder %s21, 0
    %p153 = por %p151, %p152
    %s154 = ssub.s32 %s15, %s22
    %p155 = scmp.eq.s32.totalorder %s154, 0
    %s157 = sadd.s32 %s156, 1
    %s158 = scalar_select %p155, %s156, %s157
    %p161 = pneg %p155
    %p162 = scmp.eq.s32.totalorder %s15, 1
    %p163 = por %p161, %p162
    %p164 = scmp.ne.s32.totalorder %s156, %s159
    %p165 = scmp.eq.s32.totalorder %s15, 0
    %p166 = por %p164, %p165
    %p167 = scmp.ne.s32.totalorder %s156, %s159
    %p168 = scmp.eq.s32.totalorder %s20, 1
    %p169 = por %p167, %p168
    %p170 = scmp.ne.s32.totalorder %s159, %s160
    %p171 = scmp.eq.s32.totalorder %s20, 0
    %p172 = por %p170, %p171
    %p173 = scmp.ne.s32.totalorder %s159, %s160
    %p174 = scmp.eq.s32.totalorder %s21, 1
    %p175 = por %p173, %p174
    %p177 = scmp.ne.s32.totalorder %s160, %s176
    %p178 = scmp.eq.s32.totalorder %s21, 0
    %p179 = por %p177, %p178
    %s180 = ssub.s32 %s15, %s22
    %p181 = scmp.eq.s32.totalorder %s180, 0
    %s183 = sadd.s32 %s182, 1
    %s184 = scalar_select %p181, %s182, %s183
    %p187 = pneg %p181
    %p188 = scmp.eq.s32.totalorder %s15, 1
    %p189 = por %p187, %p188
    %p190 = scmp.ne.s32.totalorder %s182, %s185
    %p191 = scmp.eq.s32.totalorder %s15, 0
    %p192 = por %p190, %p191
    %p193 = scmp.ne.s32.totalorder %s182, %s185
    %p194 = scmp.eq.s32.totalorder %s20, 1
    %p195 = por %p193, %p194
    %p196 = scmp.ne.s32.totalorder %s185, %s186
    %p197 = scmp.eq.s32.totalorder %s20, 0
    %p198 = por %p196, %p197
    %p199 = scmp.ne.s32.totalorder %s185, %s186
    %p200 = scmp.eq.s32.totalorder %s21, 1
    %p201 = por %p199, %p200
    %p203 = scmp.ne.s32.totalorder %s186, %s202
    %p204 = scmp.eq.s32.totalorder %s21, 0
    %p205 = por %p203, %p204
    %s206 = ssub.s32 %s15, %s22
    %p207 = scmp.eq.s32.totalorder %s206, 0
    %s209 = sadd.s32 %s208, 1
    %s210 = scalar_select %p207, %s208, %s209
    %p213 = pneg %p207
    %p214 = scmp.eq.s32.totalorder %s15, 1
    %p215 = por %p213, %p214
    %p216 = scmp.ne.s32.totalorder %s208, %s211
    %p217 = scmp.eq.s32.totalorder %s15, 0
    %p218 = por %p216, %p217
    %p219 = scmp.ne.s32.totalorder %s208, %s211
    %p220 = scmp.eq.s32.totalorder %s20, 1
    %p221 = por %p219, %p220
    %p222 = scmp.ne.s32.totalorder %s211, %s212
    %p223 = scmp.eq.s32.totalorder %s20, 0
    %p224 = por %p222, %p223
    %p225 = scmp.ne.s32.totalorder %s211, %s212
    %p226 = scmp.eq.s32.totalorder %s21, 1
    %p227 = por %p225, %p226
    %p229 = scmp.ne.s32.totalorder %s212, %s228
    %p230 = scmp.eq.s32.totalorder %s21, 0
    %p231 = por %p229, %p230
    %p232 = scmp.le.s32.totalorder 1, %s15
    %p233 = scmp.lt.s32.totalorder %s15, 3
    %p234 = pnand %p232, %p233
    %p235 = pneg %p234
    // Predicated region
    $region9: #{continus_paralle_conv.2} parent=5 // pred_check
      _
    $region10: #{continus_paralle_conv.2} parent=5 // pred_check_branch
      %237 = sbr.rel (%p234) target = $region12
    $region11: #{continus_paralle_conv.2} parent=5 // pred_region
      %s238 = ssub.s32 %s15, 1
      // Predicated region
      $region13: #{continus_paralle_conv.2} parent=11 // pred_check
        %p239 = pneg %p62
      $region14: #{continus_paralle_conv.2} parent=11 // pred_check_branch
        %241 = sbr.rel (%p239) target = $region16
      $region15: #{continus_paralle_conv.2} parent=11 // pred_region
        _
      $region16: #{continus_paralle_conv.2} parent=11 // pred_fallthru
        _
      // Predicated region
      $region17: #{continus_paralle_conv.2} parent=11 // pred_check
        %p242 = pneg %p83
      $region18: #{continus_paralle_conv.2} parent=11 // pred_check_branch
        %244 = sbr.rel (%p242) target = $region20
      $region19: #{continus_paralle_conv.2} parent=11 // pred_region
        _
      $region20: #{continus_paralle_conv.2} parent=11 // pred_fallthru
        _
      // Predicated region
      $region21: #{continus_paralle_conv.2} parent=11 // pred_check
        %p245 = pneg %p104
      $region22: #{continus_paralle_conv.2} parent=11 // pred_check_branch
        %247 = sbr.rel (%p245) target = $region24
      $region23: #{continus_paralle_conv.2} parent=11 // pred_region
        _
      $region24: #{continus_paralle_conv.2} parent=11 // pred_fallthru
        _
      // Predicated region
      $region25: #{continus_paralle_conv.2} parent=11 // pred_check
        %p248 = pneg %p125
      $region26: #{continus_paralle_conv.2} parent=11 // pred_check_branch
        %250 = sbr.rel (%p248) target = $region28
      $region27: #{continus_paralle_conv.2} parent=11 // pred_region
        _
      $region28: #{continus_paralle_conv.2} parent=11 // pred_fallthru
        _
      // Predicated region
      $region29: #{continus_paralle_conv.2} parent=11 // pred_check
        %p251 = pneg %p146
      $region30: #{continus_paralle_conv.2} parent=11 // pred_check_branch
        %253 = sbr.rel (%p251) target = $region32
      $region31: #{continus_paralle_conv.2} parent=11 // pred_region
        _
      $region32: #{continus_paralle_conv.2} parent=11 // pred_fallthru
        _
    $region12: #{continus_paralle_conv.2} parent=5 // pred_fallthru
      _
    %p254 = scmp.lt.s32.totalorder %s15, 2
    // Predicated region
    $region33: #{continus_paralle_conv.2} parent=5 // pred_check
      %p255 = pneg %p254
    $region34: #{continus_paralle_conv.2} parent=5 // pred_check_branch
      %257 = sbr.rel (%p255) target = $region36
    $region35: #{continus_paralle_conv.2} parent=5 // pred_region
      // Predicated region
      $region37: #{continus_paralle_conv.2} parent=35 // pred_check
        %p258 = pneg %p35
      $region38: #{continus_paralle_conv.2} parent=35 // pred_check_branch
        %260 = sbr.rel (%p258) target = $region40
      $region39: #{continus_paralle_conv.2} parent=35 // pred_region
        %p261 = scmp.lt.s32.totalorder %s15, 1
        %s262 = scalar_select %p261, %s15, 1
        %s263 = smul.addr %s262, 2
        %s264 = smul.addr %s263, 4
        %s265 = scalar_lea.vmem %s0, %s264
      $region40: #{continus_paralle_conv.2} parent=35 // pred_fallthru
        _
    $region36: #{continus_paralle_conv.2} parent=5 // pred_fallthru
      _
    %p266 = scmp.le.s32.totalorder 1, %s15
    %p267 = scmp.lt.s32.totalorder %s15, 3
    %p268 = pnand %p266, %p267
    %p269 = pneg %p268
    // Predicated region
    $region41: #{continus_paralle_conv.2} parent=5 // pred_check
      _
    $region42: #{continus_paralle_conv.2} parent=5 // pred_check_branch
      %271 = sbr.rel (%p268) target = $region44
    $region43: #{continus_paralle_conv.2} parent=5 // pred_region
      %s272 = ssub.s32 %s15, 1
      %p273 = scmp.lt.s32.totalorder %s20, 1
      %s274 = scalar_select %p273, %s20, 1
      %s275 = smul.addr %s274, 2
      %s276 = smul.addr %s275, 4
      %s277 = scalar_lea.vmem %s0, %s276
      %p278 = pneg %p41
      %p279 = pneg %p38
      %p280 = pneg %p62
      %p281 = pneg %p59
      %p282 = pneg %p83
      %p283 = pneg %p80
      %p284 = pneg %p104
      %p285 = pneg %p101
      %p286 = pneg %p125
      %p287 = pneg %p122
      %p288 = pneg %p146
      %p289 = pneg %p143
      %p290 = pneg %p172
      %p291 = pneg %p169
      %p292 = scmp.lt.s32.totalorder %s20, 1
      %s293 = scalar_select %p292, %s20, 1
      %s294 = smul.addr %s293, 2
      %s295 = smul.addr %s294, 4
      %s296 = scalar_lea.vmem %s6, %s295
      %p297 = pneg %p198
      %p298 = pneg %p195
      %p299 = scmp.lt.s32.totalorder %s20, 1
      %s300 = scalar_select %p299, %s20, 1
      %s301 = smul.addr %s300, 8
      %s302 = scalar_lea.vmem %s7, %s301
      %p303 = pneg %p224
      %p304 = pneg %p221
      %p305 = scmp.lt.s32.totalorder %s20, 1
      %s306 = scalar_select %p305, %s20, 1
      %s307 = smul.addr %s306, 8
      %s308 = scalar_lea.vmem %s8, %s307
      %p309 = scmp.lt.s32.totalorder %s20, 1
      %s310 = scalar_select %p309, %s20, 1
      %s311 = smul.addr %s310, 2
      %s312 = smul.addr %s311, 4
      %s313 = scalar_lea.vmem %s0, %s312
      %p314 = scmp.lt.s32.totalorder %s20, 1
      %s315 = scalar_select %p314, %s20, 1
      %s316 = smul.addr %s315, 2
      %s317 = smul.addr %s316, 4
      %s318 = scalar_lea.vmem %s6, %s317
      %p319 = scmp.lt.s32.totalorder %s20, 1
      %s320 = scalar_select %p319, %s20, 1
      %s321 = smul.addr %s320, 8
      %s322 = scalar_lea.vmem %s7, %s321
      %p323 = scmp.lt.s32.totalorder %s20, 1
      %s324 = scalar_select %p323, %s20, 1
      %s325 = smul.addr %s324, 8
      %s326 = scalar_lea.vmem %s8, %s325
      %v328 = vld [vmem:[%s313] sm:$0xff]
      %v329 = vld [vmem:[%s1] sm:$0xf]
      %331 = vset.pattern.permute.xlu0 0
      %332 = vperm.xlu0 %331, %v329
      %v333 = vpop.permute.xlu0 %332
      %v335 = vunpack.c.l.s4 839922192
      %v336 = vunpack.c.0.s8 %v335
      %v337 = vlaneseq
      %v338 = vshrl.u32 %v337, 7
      %v339 = vsub.s32 %v336, %v338
      %v340 = vrot.slane %v333, %v339
      %v342 = vmul.f32 %v328, %v340
      %v343 = vld [vmem:[%s2] sm:$0xf]
      %345 = vset.pattern.permute.xlu0 0
      %346 = vperm.xlu0 %345, %v343
      %v347 = vpop.permute.xlu0 %346
      %v349 = vunpack.c.l.s4 839922192
      %v350 = vunpack.c.0.s8 %v349
      %v351 = vlaneseq
      %v352 = vshrl.u32 %v351, 7
      %v353 = vsub.s32 %v350, %v352
      %v354 = vrot.slane %v347, %v353
      %v356 = vadd.f32 %v342, %v354
      %v357 = vxor.u32 %v356, 2147483648
      %v358 = vmul.f32 %v357, 1.442695
      %v359 = vpow.pop %v358
      %v360 = vadd.f32 %v359, 1.0
      %v361 = vrcp.pop %v360
      %v362 = vmul.f32 1.0, %v361
      %v364 = vcombine.high %v362, %v362
      %366 = vrot.lane.b32.xlu0 %v362, 17
      %v367 = vpop.permute.xlu0 %366
      %368 = vrot.lane.b32.xlu0 %v364, 17
      %v369 = vpop.permute.xlu0 %368
      %v370 = vlaneseq
      %v371 = vand.u32 %v370, 127
      %vm372 = vcmp.lt.s32.totalorder %v371, 17
      %v373 = vsel %vm372, %v367, %v369
      %v374 = vsel %vm372, %v369, %v367
      %v375 = vld [vmem:[%s5] sm:$0x3]
      %v377 = vlaneseq
      %v378 = vshrl.u32 %v377, 7
      %v379 = vsub.s32 0, %v378
      %v380 = vrot.slane %v375, %v379
      %v381 = vlaneseq
      %v382 = vshrl.u32 %v381, 7
      %v383 = vsub.s32 1, %v382
      %v384 = vrot.slane %v375, %v383
      %v387 = vmul.f32 %v374, %v380
      %v388 = vmul.f32 %v373, %v384
      %v389 = vld [vmem:[%s3] sm:$0xf]
      %v390 = vpack.c.bf16 %v387, %v387
      %v391 = vpack.c.bf16 %v388, %v388
      %392 = vrot.lane.b32.xlu0 %v362, 16
      %v393 = vpop.permute.xlu0 %392
      %394 = vrot.lane.b32.xlu0 %v364, 16
      %v395 = vpop.permute.xlu0 %394
      %vm396 = vcmp.lt.s32.totalorder %v371, 16
      %v397 = vsel %vm396, %v393, %v395
      %v398 = vsel %vm396, %v395, %v393
      %s399 = scalar_lea.vmem %s5, 2
      %v400 = vld [vmem:[%s399] sm:$0x3]
      %v402 = vlaneseq
      %v403 = vshrl.u32 %v402, 7
      %v404 = vsub.s32 0, %v403
      %v405 = vrot.slane %v400, %v404
      %v406 = vlaneseq
      %v407 = vshrl.u32 %v406, 7
      %v408 = vsub.s32 1, %v407
      %v409 = vrot.slane %v400, %v408
      %v412 = vmul.f32 %v398, %v405
      %v413 = vmul.f32 %v397, %v409
      %s414 = scalar_lea.vmem %s3, 4
      %v415 = vld [vmem:[%s414] sm:$0xf]
      %v416 = vpack.c.bf16 %v412, %v412
      %v417 = vpack.c.bf16 %v413, %v413
      %vm418 = vcmask 31744
      %v420 = vsel %vm418, %v415, 0
      %vm422 = vcmask 1041408
      %v424 = vsel %vm422, %v416, 0
      %v427 = vsel %vm422, %v417, 0
      %429 = vmatprep.subr.bf16.mxu0 %v427
      %430 = vmatpush1.bf16.msra.mxu0 %v424
      %431 = vmatprep.subr.bf16.mxu0 0
      %432 = vmatpush1.bf16.msra.mxu0 0
      %433 = vmatprep.subr.bf16.mxu0 0
      %434 = vmatpush1.bf16.msra.mxu0 0
      %435 = vmatprep.subr.bf16.mxu0 0
      %436 = vmatpush1.bf16.msra.mxu0 0
      %437 = vmatprep.subr.bf16.mxu0 0
      %438 = vmatpush1.bf16.msra.mxu0 0
      %439 = vmatprep.subr.bf16.mxu0 0
      %440 = vmatpush1.bf16.msra.mxu0 0
      %441 = vmatprep.subr.bf16.mxu0 0
      %442 = vmatpush1.bf16.msra.mxu0 0
      %443 = vmatprep.subr.bf16.mxu0 0
      %444 = vmatpush1.bf16.msra.mxu0 0
      %445 = vmatprep.subr.bf16.mxu0 0
      %446 = vmatpush1.bf16.msra.mxu0 0
      %447 = vmatprep.subr.bf16.mxu0 0
      %448 = vmatpush1.bf16.msra.mxu0 0
      %449 = vmatprep.subr.bf16.mxu0 0
      %450 = vmatpush1.bf16.msra.mxu0 0
      %451 = vmatprep.subr.bf16.mxu0 0
      %452 = vmatpush1.bf16.msra.mxu0 0
      %453 = vmatprep.subr.bf16.mxu0 0
      %454 = vmatpush1.bf16.msra.mxu0 0
      %455 = vmatprep.subr.bf16.mxu0 0
      %456 = vmatpush1.bf16.msra.mxu0 0
      %457 = vmatprep.subr.bf16.mxu0 0
      %458 = vmatpush1.bf16.msra.mxu0 0
      %459 = vmatprep.subr.bf16.mxu0 0
      %460 = vmatpush1.bf16.msra.mxu0 0
      %461 = vmatprep.mubr.bf16.mxu0 0
      %462 = vmatmul.mubr.bf16.gmra.mrb[0].mxu0 %v420
      %v463 = vpop.f32.mrb[0].mxu0
      %v464 = vadd.f32 0.0, %v463
      %v465 = vpop.f32.mrb[0].mxu0
      %v466 = vadd.f32 0.0, %v465
      %v467 = vpop.f32.mrb[0].mxu0
      %v468 = vpop.f32.mrb[0].mxu0
      %469 = vdwg.mxu0
      %v471 = vsel %vm418, %v389, 0
      %v474 = vsel %vm422, %v390, 0
      %v477 = vsel %vm422, %v391, 0
      %479 = vmatprep.subr.bf16.mxu0 %v477
      %480 = vmatpush1.bf16.msra.mxu0 %v474
      %481 = vmatprep.subr.bf16.mxu0 0
      %482 = vmatpush1.bf16.msra.mxu0 0
      %483 = vmatprep.subr.bf16.mxu0 0
      %484 = vmatpush1.bf16.msra.mxu0 0
      %485 = vmatprep.subr.bf16.mxu0 0
      %486 = vmatpush1.bf16.msra.mxu0 0
      %487 = vmatprep.subr.bf16.mxu0 0
      %488 = vmatpush1.bf16.msra.mxu0 0
      %489 = vmatprep.subr.bf16.mxu0 0
      %490 = vmatpush1.bf16.msra.mxu0 0
      %491 = vmatprep.subr.bf16.mxu0 0
      %492 = vmatpush1.bf16.msra.mxu0 0
      %493 = vmatprep.subr.bf16.mxu0 0
      %494 = vmatpush1.bf16.msra.mxu0 0
      %495 = vmatprep.subr.bf16.mxu0 0
      %496 = vmatpush1.bf16.msra.mxu0 0
      %497 = vmatprep.subr.bf16.mxu0 0
      %498 = vmatpush1.bf16.msra.mxu0 0
      %499 = vmatprep.subr.bf16.mxu0 0
      %500 = vmatpush1.bf16.msra.mxu0 0
      %501 = vmatprep.subr.bf16.mxu0 0
      %502 = vmatpush1.bf16.msra.mxu0 0
      %503 = vmatprep.subr.bf16.mxu0 0
      %504 = vmatpush1.bf16.msra.mxu0 0
      %505 = vmatprep.subr.bf16.mxu0 0
      %506 = vmatpush1.bf16.msra.mxu0 0
      %507 = vmatprep.subr.bf16.mxu0 0
      %508 = vmatpush1.bf16.msra.mxu0 0
      %509 = vmatprep.subr.bf16.mxu0 0
      %510 = vmatpush1.bf16.msra.mxu0 0
      %511 = vmatprep.mubr.bf16.mxu0 0
      %512 = vmatmul.mubr.bf16.gmra.mrb[0].mxu0 %v471
      %v513 = vpop.f32.mrb[0].mxu0
      %v514 = vadd.f32 %v464, %v513
      %v515 = vpop.f32.mrb[0].mxu0
      %v516 = vadd.f32 %v466, %v515
      %v517 = vpop.f32.mrb[0].mxu0
      %v518 = vpop.f32.mrb[0].mxu0
      %519 = vdwg.mxu0
      %520 = vrot.lane.b32.xlu0 %v362, 15
      %v521 = vpop.permute.xlu0 %520
      %522 = vrot.lane.b32.xlu0 %v364, 15
      %v523 = vpop.permute.xlu0 %522
      %vm524 = vcmp.lt.s32.totalorder %v371, 15
      %v525 = vsel %vm524, %v521, %v523
      %v526 = vsel %vm524, %v523, %v521
      %s527 = scalar_lea.vmem %s5, 4
      %v528 = vld [vmem:[%s527] sm:$0x3]
      %v530 = vlaneseq
      %v531 = vshrl.u32 %v530, 7
      %v532 = vsub.s32 0, %v531
      %v533 = vrot.slane %v528, %v532
      %v534 = vlaneseq
      %v535 = vshrl.u32 %v534, 7
      %v536 = vsub.s32 1, %v535
      %v537 = vrot.slane %v528, %v536
      %v540 = vmul.f32 %v526, %v533
      %v541 = vmul.f32 %v525, %v537
      %s542 = scalar_lea.vmem %s3, 8
      %v543 = vld [vmem:[%s542] sm:$0xf]
      %v544 = vpack.c.bf16 %v540, %v540
      %v545 = vpack.c.bf16 %v541, %v541
      %v547 = vsel %vm418, %v543, 0
      %v550 = vsel %vm422, %v544, 0
      %v553 = vsel %vm422, %v545, 0
      %555 = vmatprep.subr.bf16.mxu0 %v553
      %556 = vmatpush1.bf16.msra.mxu0 %v550
      %557 = vmatprep.subr.bf16.mxu0 0
      %558 = vmatpush1.bf16.msra.mxu0 0
      %559 = vmatprep.subr.bf16.mxu0 0
      %560 = vmatpush1.bf16.msra.mxu0 0
      %561 = vmatprep.subr.bf16.mxu0 0
      %562 = vmatpush1.bf16.msra.mxu0 0
      %563 = vmatprep.subr.bf16.mxu0 0
      %564 = vmatpush1.bf16.msra.mxu0 0
      %565 = vmatprep.subr.bf16.mxu0 0
      %566 = vmatpush1.bf16.msra.mxu0 0
      %567 = vmatprep.subr.bf16.mxu0 0
      %568 = vmatpush1.bf16.msra.mxu0 0
      %569 = vmatprep.subr.bf16.mxu0 0
      %570 = vmatpush1.bf16.msra.mxu0 0
      %571 = vmatprep.subr.bf16.mxu0 0
      %572 = vmatpush1.bf16.msra.mxu0 0
      %573 = vmatprep.subr.bf16.mxu0 0
      %574 = vmatpush1.bf16.msra.mxu0 0
      %575 = vmatprep.subr.bf16.mxu0 0
      %576 = vmatpush1.bf16.msra.mxu0 0
      %577 = vmatprep.subr.bf16.mxu0 0
      %578 = vmatpush1.bf16.msra.mxu0 0
      %579 = vmatprep.subr.bf16.mxu0 0
      %580 = vmatpush1.bf16.msra.mxu0 0
      %581 = vmatprep.subr.bf16.mxu0 0
      %582 = vmatpush1.bf16.msra.mxu0 0
      %583 = vmatprep.subr.bf16.mxu0 0
      %584 = vmatpush1.bf16.msra.mxu0 0
      %585 = vmatprep.subr.bf16.mxu0 0
      %586 = vmatpush1.bf16.msra.mxu0 0
      %587 = vmatprep.mubr.bf16.mxu0 0
      %588 = vmatmul.mubr.bf16.gmra.mrb[0].mxu0 %v547
      %v589 = vpop.f32.mrb[0].mxu0
      %v590 = vadd.f32 0.0, %v589
      %v591 = vpop.f32.mrb[0].mxu0
      %v592 = vadd.f32 0.0, %v591
      %v593 = vpop.f32.mrb[0].mxu0
      %v594 = vpop.f32.mrb[0].mxu0
      %595 = vdwg.mxu0
      %v596 = vadd.f32 %v514, %v590
      %v597 = vadd.f32 %v516, %v592
      %598 = vrot.lane.b32.xlu0 %v362, 1
      %v599 = vpop.permute.xlu0 %598
      %600 = vrot.lane.b32.xlu0 %v364, 1
      %v601 = vpop.permute.xlu0 %600
      %vm602 = vcmp.lt.s32.totalorder %v371, 1
      %v603 = vsel %vm602, %v599, %v601
      %v604 = vsel %vm602, %v601, %v599
      %s605 = scalar_lea.vmem %s5, 6
      %v606 = vld [vmem:[%s605] sm:$0x3]
      %v608 = vlaneseq
      %v609 = vshrl.u32 %v608, 7
      %v610 = vsub.s32 0, %v609
      %v611 = vrot.slane %v606, %v610
      %v612 = vlaneseq
      %v613 = vshrl.u32 %v612, 7
      %v614 = vsub.s32 1, %v613
      %v615 = vrot.slane %v606, %v614
      %v618 = vmul.f32 %v604, %v611
      %v619 = vmul.f32 %v603, %v615
      %s620 = scalar_lea.vmem %s3, 12
      %v621 = vld [vmem:[%s620] sm:$0xf]
      %v622 = vpack.c.bf16 %v618, %v618
      %v623 = vpack.c.bf16 %v619, %v619
      %v625 = vsel %vm418, %v621, 0
      %v628 = vsel %vm422, %v622, 0
      %v631 = vsel %vm422, %v623, 0
      %633 = vmatprep.subr.bf16.mxu0 %v631
      %634 = vmatpush1.bf16.msra.mxu0 %v628
      %635 = vmatprep.subr.bf16.mxu0 0
      %636 = vmatpush1.bf16.msra.mxu0 0
      %637 = vmatprep.subr.bf16.mxu0 0
      %638 = vmatpush1.bf16.msra.mxu0 0
      %639 = vmatprep.subr.bf16.mxu0 0
      %640 = vmatpush1.bf16.msra.mxu0 0
      %641 = vmatprep.subr.bf16.mxu0 0
      %642 = vmatpush1.bf16.msra.mxu0 0
      %643 = vmatprep.subr.bf16.mxu0 0
      %644 = vmatpush1.bf16.msra.mxu0 0
      %645 = vmatprep.subr.bf16.mxu0 0
      %646 = vmatpush1.bf16.msra.mxu0 0
      %647 = vmatprep.subr.bf16.mxu0 0
      %648 = vmatpush1.bf16.msra.mxu0 0
      %649 = vmatprep.subr.bf16.mxu0 0
      %650 = vmatpush1.bf16.msra.mxu0 0
      %651 = vmatprep.subr.bf16.mxu0 0
      %652 = vmatpush1.bf16.msra.mxu0 0
      %653 = vmatprep.subr.bf16.mxu0 0
      %654 = vmatpush1.bf16.msra.mxu0 0
      %655 = vmatprep.subr.bf16.mxu0 0
      %656 = vmatpush1.bf16.msra.mxu0 0
      %657 = vmatprep.subr.bf16.mxu0 0
      %658 = vmatpush1.bf16.msra.mxu0 0
      %659 = vmatprep.subr.bf16.mxu0 0
      %660 = vmatpush1.bf16.msra.mxu0 0
      %661 = vmatprep.subr.bf16.mxu0 0
      %662 = vmatpush1.bf16.msra.mxu0 0
      %663 = vmatprep.subr.bf16.mxu0 0
      %664 = vmatpush1.bf16.msra.mxu0 0
      %665 = vmatprep.mubr.bf16.mxu0 0
      %666 = vmatmul.mubr.bf16.gmra.mrb[0].mxu0 %v625
      %v667 = vpop.f32.mrb[0].mxu0
      %v668 = vadd.f32 0.0, %v667
      %v669 = vpop.f32.mrb[0].mxu0
      %v670 = vadd.f32 0.0, %v669
      %v671 = vpop.f32.mrb[0].mxu0
      %v672 = vpop.f32.mrb[0].mxu0
      %673 = vdwg.mxu0
      %v674 = vadd.f32 %v596, %v668
      %v675 = vadd.f32 %v597, %v670
      %s676 = scalar_lea.vmem %s3, 16
      %v677 = vld [vmem:[%s676] sm:$0xf]
      %v678 = vpack.c.bf16 %v362, %v362
      %v679 = vpack.c.bf16 %v364, %v364
      %v681 = vsel %vm418, %v677, 0
      %v684 = vsel %vm422, %v678, 0
      %v687 = vsel %vm422, %v679, 0
      %689 = vmatprep.subr.bf16.mxu0 %v687
      %690 = vmatpush1.bf16.msra.mxu0 %v684
      %691 = vmatprep.subr.bf16.mxu0 0
      %692 = vmatpush1.bf16.msra.mxu0 0
      %693 = vmatprep.subr.bf16.mxu0 0
      %694 = vmatpush1.bf16.msra.mxu0 0
      %695 = vmatprep.subr.bf16.mxu0 0
      %696 = vmatpush1.bf16.msra.mxu0 0
      %697 = vmatprep.subr.bf16.mxu0 0
      %698 = vmatpush1.bf16.msra.mxu0 0
      %699 = vmatprep.subr.bf16.mxu0 0
      %700 = vmatpush1.bf16.msra.mxu0 0
      %701 = vmatprep.subr.bf16.mxu0 0
      %702 = vmatpush1.bf16.msra.mxu0 0
      %703 = vmatprep.subr.bf16.mxu0 0
      %704 = vmatpush1.bf16.msra.mxu0 0
      %705 = vmatprep.subr.bf16.mxu0 0
      %706 = vmatpush1.bf16.msra.mxu0 0
      %707 = vmatprep.subr.bf16.mxu0 0
      %708 = vmatpush1.bf16.msra.mxu0 0
      %709 = vmatprep.subr.bf16.mxu0 0
      %710 = vmatpush1.bf16.msra.mxu0 0
      %711 = vmatprep.subr.bf16.mxu0 0
      %712 = vmatpush1.bf16.msra.mxu0 0
      %713 = vmatprep.subr.bf16.mxu0 0
      %714 = vmatpush1.bf16.msra.mxu0 0
      %715 = vmatprep.subr.bf16.mxu0 0
      %716 = vmatpush1.bf16.msra.mxu0 0
      %717 = vmatprep.subr.bf16.mxu0 0
      %718 = vmatpush1.bf16.msra.mxu0 0
      %719 = vmatprep.subr.bf16.mxu0 0
      %720 = vmatpush1.bf16.msra.mxu0 0
      %721 = vmatprep.mubr.bf16.mxu0 0
      %722 = vmatmul.mubr.bf16.gmra.mrb[0].mxu0 %v681
      %v723 = vpop.f32.mrb[0].mxu0
      %v724 = vadd.f32 0.0, %v723
      %v725 = vpop.f32.mrb[0].mxu0
      %v726 = vadd.f32 0.0, %v725
      %v727 = vpop.f32.mrb[0].mxu0
      %v728 = vpop.f32.mrb[0].mxu0
      %729 = vdwg.mxu0
      %v730 = vadd.f32 %v674, %v724
      %v731 = vadd.f32 %v675, %v726
      %732 = vrot.lane.b32.xlu0 %v362, 127
      %v733 = vpop.permute.xlu0 %732
      %734 = vrot.lane.b32.xlu0 %v364, 127
      %v735 = vpop.permute.xlu0 %734
      %vm736 = vcmp.lt.s32.totalorder %v371, 127
      %v737 = vsel %vm736, %v733, %v735
      %v738 = vsel %vm736, %v735, %v733
      %s739 = scalar_lea.vmem %s5, 10
      %v740 = vld [vmem:[%s739] sm:$0x3]
      %v742 = vlaneseq
      %v743 = vshrl.u32 %v742, 7
      %v744 = vsub.s32 0, %v743
      %v745 = vrot.slane %v740, %v744
      %v746 = vlaneseq
      %v747 = vshrl.u32 %v746, 7
      %v748 = vsub.s32 1, %v747
      %v749 = vrot.slane %v740, %v748
      %v752 = vmul.f32 %v737, %v745
      %v753 = vmul.f32 %v738, %v749
      %s754 = scalar_lea.vmem %s3, 20
      %v755 = vld [vmem:[%s754] sm:$0xf]
      %v756 = vpack.c.bf16 %v752, %v752
      %v757 = vpack.c.bf16 %v753, %v753
      %v759 = vsel %vm418, %v755, 0
      %v762 = vsel %vm422, %v756, 0
      %v765 = vsel %vm422, %v757, 0
      %767 = vmatprep.subr.bf16.mxu0 %v765
      %768 = vmatpush1.bf16.msra.mxu0 %v762
      %769 = vmatprep.subr.bf16.mxu0 0
      %770 = vmatpush1.bf16.msra.mxu0 0
      %771 = vmatprep.subr.bf16.mxu0 0
      %772 = vmatpush1.bf16.msra.mxu0 0
      %773 = vmatprep.subr.bf16.mxu0 0
      %774 = vmatpush1.bf16.msra.mxu0 0
      %775 = vmatprep.subr.bf16.mxu0 0
      %776 = vmatpush1.bf16.msra.mxu0 0
      %777 = vmatprep.subr.bf16.mxu0 0
      %778 = vmatpush1.bf16.msra.mxu0 0
      %779 = vmatprep.subr.bf16.mxu0 0
      %780 = vmatpush1.bf16.msra.mxu0 0
      %781 = vmatprep.subr.bf16.mxu0 0
      %782 = vmatpush1.bf16.msra.mxu0 0
      %783 = vmatprep.subr.bf16.mxu0 0
      %784 = vmatpush1.bf16.msra.mxu0 0
      %785 = vmatprep.subr.bf16.mxu0 0
      %786 = vmatpush1.bf16.msra.mxu0 0
      %787 = vmatprep.subr.bf16.mxu0 0
      %788 = vmatpush1.bf16.msra.mxu0 0
      %789 = vmatprep.subr.bf16.mxu0 0
      %790 = vmatpush1.bf16.msra.mxu0 0
      %791 = vmatprep.subr.bf16.mxu0 0
      %792 = vmatpush1.bf16.msra.mxu0 0
      %793 = vmatprep.subr.bf16.mxu0 0
      %794 = vmatpush1.bf16.msra.mxu0 0
      %795 = vmatprep.subr.bf16.mxu0 0
      %796 = vmatpush1.bf16.msra.mxu0 0
      %797 = vmatprep.subr.bf16.mxu0 0
      %798 = vmatpush1.bf16.msra.mxu0 0
      %799 = vmatprep.mubr.bf16.mxu0 0
      %800 = vmatmul.mubr.bf16.gmra.mrb[0].mxu0 %v759
      %v801 = vpop.f32.mrb[0].mxu0
      %v802 = vadd.f32 0.0, %v801
      %v803 = vpop.f32.mrb[0].mxu0
      %v804 = vadd.f32 0.0, %v803
      %v805 = vpop.f32.mrb[0].mxu0
      %v806 = vpop.f32.mrb[0].mxu0
      %807 = vdwg.mxu0
      %v808 = vadd.f32 %v730, %v802
      %v809 = vadd.f32 %v731, %v804
      %810 = vrot.lane.b32.xlu0 %v362, 113
      %v811 = vpop.permute.xlu0 %810
      %812 = vrot.lane.b32.xlu0 %v364, 113
      %v813 = vpop.permute.xlu0 %812
      %vm814 = vcmp.lt.s32.totalorder %v371, 113
      %v815 = vsel %vm814, %v811, %v813
      %v816 = vsel %vm814, %v813, %v811
      %s817 = scalar_lea.vmem %s5, 12
      %v818 = vld [vmem:[%s817] sm:$0x3]
      %v820 = vlaneseq
      %v821 = vshrl.u32 %v820, 7
      %v822 = vsub.s32 0, %v821
      %v823 = vrot.slane %v818, %v822
      %v824 = vlaneseq
      %v825 = vshrl.u32 %v824, 7
      %v826 = vsub.s32 1, %v825
      %v827 = vrot.slane %v818, %v826
      %v830 = vmul.f32 %v815, %v823
      %v831 = vmul.f32 %v816, %v827
      %s832 = scalar_lea.vmem %s3, 24
      %v833 = vld [vmem:[%s832] sm:$0xf]
      %v834 = vpack.c.bf16 %v830, %v830
      %v835 = vpack.c.bf16 %v831, %v831
      %v837 = vsel %vm418, %v833, 0
      %v840 = vsel %vm422, %v834, 0
      %v843 = vsel %vm422, %v835, 0
      %845 = vmatprep.subr.bf16.mxu0 %v843
      %846 = vmatpush1.bf16.msra.mxu0 %v840
      %847 = vmatprep.subr.bf16.mxu0 0
      %848 = vmatpush1.bf16.msra.mxu0 0
      %849 = vmatprep.subr.bf16.mxu0 0
      %850 = vmatpush1.bf16.msra.mxu0 0
      %851 = vmatprep.subr.bf16.mxu0 0
      %852 = vmatpush1.bf16.msra.mxu0 0
      %853 = vmatprep.subr.bf16.mxu0 0
      %854 = vmatpush1.bf16.msra.mxu0 0
      %855 = vmatprep.subr.bf16.mxu0 0
      %856 = vmatpush1.bf16.msra.mxu0 0
      %857 = vmatprep.subr.bf16.mxu0 0
      %858 = vmatpush1.bf16.msra.mxu0 0
      %859 = vmatprep.subr.bf16.mxu0 0
      %860 = vmatpush1.bf16.msra.mxu0 0
      %861 = vmatprep.subr.bf16.mxu0 0
      %862 = vmatpush1.bf16.msra.mxu0 0
      %863 = vmatprep.subr.bf16.mxu0 0
      %864 = vmatpush1.bf16.msra.mxu0 0
      %865 = vmatprep.subr.bf16.mxu0 0
      %866 = vmatpush1.bf16.msra.mxu0 0
      %867 = vmatprep.subr.bf16.mxu0 0
      %868 = vmatpush1.bf16.msra.mxu0 0
      %869 = vmatprep.subr.bf16.mxu0 0
      %870 = vmatpush1.bf16.msra.mxu0 0
      %871 = vmatprep.subr.bf16.mxu0 0
      %872 = vmatpush1.bf16.msra.mxu0 0
      %873 = vmatprep.subr.bf16.mxu0 0
      %874 = vmatpush1.bf16.msra.mxu0 0
      %875 = vmatprep.subr.bf16.mxu0 0
      %876 = vmatpush1.bf16.msra.mxu0 0
      %877 = vmatprep.mubr.bf16.mxu0 0
      %878 = vmatmul.mubr.bf16.gmra.mrb[0].mxu0 %v837
      %v879 = vpop.f32.mrb[0].mxu0
      %v880 = vadd.f32 0.0, %v879
      %v881 = vpop.f32.mrb[0].mxu0
      %v882 = vadd.f32 0.0, %v881
      %v883 = vpop.f32.mrb[0].mxu0
      %v884 = vpop.f32.mrb[0].mxu0
      %885 = vdwg.mxu0
      %v886 = vadd.f32 %v808, %v880
      %v887 = vadd.f32 %v809, %v882
      %888 = vrot.lane.b32.xlu0 %v362, 112
      %v889 = vpop.permute.xlu0 %888
      %890 = vrot.lane.b32.xlu0 %v364, 112
      %v891 = vpop.permute.xlu0 %890
      %vm892 = vcmp.lt.s32.totalorder %v371, 112
      %v893 = vsel %vm892, %v889, %v891
      %v894 = vsel %vm892, %v891, %v889
      %s895 = scalar_lea.vmem %s5, 14
      %v896 = vld [vmem:[%s895] sm:$0x3]
      %v898 = vlaneseq
      %v899 = vshrl.u32 %v898, 7
      %v900 = vsub.s32 0, %v899
      %v901 = vrot.slane %v896, %v900
      %v902 = vlaneseq
      %v903 = vshrl.u32 %v902, 7
      %v904 = vsub.s32 1, %v903
      %v905 = vrot.slane %v896, %v904
      %v908 = vmul.f32 %v893, %v901
      %v909 = vmul.f32 %v894, %v905
      %s910 = scalar_lea.vmem %s3, 28
      %v911 = vld [vmem:[%s910] sm:$0xf]
      %v912 = vpack.c.bf16 %v908, %v908
      %v913 = vpack.c.bf16 %v909, %v909
      %v915 = vsel %vm418, %v911, 0
      %v918 = vsel %vm422, %v912, 0
      %v921 = vsel %vm422, %v913, 0
      %923 = vmatprep.subr.bf16.mxu0 %v921
      %924 = vmatpush1.bf16.msra.mxu0 %v918
      %925 = vmatprep.subr.bf16.mxu0 0
      %926 = vmatpush1.bf16.msra.mxu0 0
      %927 = vmatprep.subr.bf16.mxu0 0
      %928 = vmatpush1.bf16.msra.mxu0 0
      %929 = vmatprep.subr.bf16.mxu0 0
      %930 = vmatpush1.bf16.msra.mxu0 0
      %931 = vmatprep.subr.bf16.mxu0 0
      %932 = vmatpush1.bf16.msra.mxu0 0
      %933 = vmatprep.subr.bf16.mxu0 0
      %934 = vmatpush1.bf16.msra.mxu0 0
      %935 = vmatprep.subr.bf16.mxu0 0
      %936 = vmatpush1.bf16.msra.mxu0 0
      %937 = vmatprep.subr.bf16.mxu0 0
      %938 = vmatpush1.bf16.msra.mxu0 0
      %939 = vmatprep.subr.bf16.mxu0 0
      %940 = vmatpush1.bf16.msra.mxu0 0
      %941 = vmatprep.subr.bf16.mxu0 0
      %942 = vmatpush1.bf16.msra.mxu0 0
      %943 = vmatprep.subr.bf16.mxu0 0
      %944 = vmatpush1.bf16.msra.mxu0 0
      %945 = vmatprep.subr.bf16.mxu0 0
      %946 = vmatpush1.bf16.msra.mxu0 0
      %947 = vmatprep.subr.bf16.mxu0 0
      %948 = vmatpush1.bf16.msra.mxu0 0
      %949 = vmatprep.subr.bf16.mxu0 0
      %950 = vmatpush1.bf16.msra.mxu0 0
      %951 = vmatprep.subr.bf16.mxu0 0
      %952 = vmatpush1.bf16.msra.mxu0 0
      %953 = vmatprep.subr.bf16.mxu0 0
      %954 = vmatpush1.bf16.msra.mxu0 0
      %955 = vmatprep.mubr.bf16.mxu0 0
      %956 = vmatmul.mubr.bf16.gmra.mrb[0].mxu0 %v915
      %v957 = vpop.f32.mrb[0].mxu0
      %v958 = vadd.f32 0.0, %v957
      %v959 = vpop.f32.mrb[0].mxu0
      %v960 = vadd.f32 0.0, %v959
      %v961 = vpop.f32.mrb[0].mxu0
      %v962 = vpop.f32.mrb[0].mxu0
      %963 = vdwg.mxu0
      %v964 = vadd.f32 %v886, %v958
      %v965 = vadd.f32 %v887, %v960
      %966 = vrot.lane.b32.xlu0 %v362, 111
      %v967 = vpop.permute.xlu0 %966
      %968 = vrot.lane.b32.xlu0 %v364, 111
      %v969 = vpop.permute.xlu0 %968
      %vm970 = vcmp.lt.s32.totalorder %v371, 111
      %v971 = vsel %vm970, %v967, %v969
      %v972 = vsel %vm970, %v969, %v967
      %s973 = scalar_lea.vmem %s5, 16
      %v974 = vld [vmem:[%s973] sm:$0x3]
      %v976 = vlaneseq
      %v977 = vshrl.u32 %v976, 7
      %v978 = vsub.s32 0, %v977
      %v979 = vrot.slane %v974, %v978
      %v980 = vlaneseq
      %v981 = vshrl.u32 %v980, 7
      %v982 = vsub.s32 1, %v981
      %v983 = vrot.slane %v974, %v982
      %v986 = vmul.f32 %v971, %v979
      %v987 = vmul.f32 %v972, %v983
      %s988 = scalar_lea.vmem %s3, 32
      %v989 = vld [vmem:[%s988] sm:$0xf]
      %v990 = vpack.c.bf16 %v986, %v986
      %v991 = vpack.c.bf16 %v987, %v987
      %v993 = vsel %vm418, %v989, 0
      %v996 = vsel %vm422, %v990, 0
      %v999 = vsel %vm422, %v991, 0
      %1001 = vmatprep.subr.bf16.mxu0 %v999
      %1002 = vmatpush1.bf16.msra.mxu0 %v996
      %1003 = vmatprep.subr.bf16.mxu0 0
      %1004 = vmatpush1.bf16.msra.mxu0 0
      %1005 = vmatprep.subr.bf16.mxu0 0
      %1006 = vmatpush1.bf16.msra.mxu0 0
      %1007 = vmatprep.subr.bf16.mxu0 0
      %1008 = vmatpush1.bf16.msra.mxu0 0
      %1009 = vmatprep.subr.bf16.mxu0 0
      %1010 = vmatpush1.bf16.msra.mxu0 0
      %1011 = vmatprep.subr.bf16.mxu0 0
      %1012 = vmatpush1.bf16.msra.mxu0 0
      %1013 = vmatprep.subr.bf16.mxu0 0
      %1014 = vmatpush1.bf16.msra.mxu0 0
      %1015 = vmatprep.subr.bf16.mxu0 0
      %1016 = vmatpush1.bf16.msra.mxu0 0
      %1017 = vmatprep.subr.bf16.mxu0 0
      %1018 = vmatpush1.bf16.msra.mxu0 0
      %1019 = vmatprep.subr.bf16.mxu0 0
      %1020 = vmatpush1.bf16.msra.mxu0 0
      %1021 = vmatprep.subr.bf16.mxu0 0
      %1022 = vmatpush1.bf16.msra.mxu0 0
      %1023 = vmatprep.subr.bf16.mxu0 0
      %1024 = vmatpush1.bf16.msra.mxu0 0
      %1025 = vmatprep.subr.bf16.mxu0 0
      %1026 = vmatpush1.bf16.msra.mxu0 0
      %1027 = vmatprep.subr.bf16.mxu0 0
      %1028 = vmatpush1.bf16.msra.mxu0 0
      %1029 = vmatprep.subr.bf16.mxu0 0
      %1030 = vmatpush1.bf16.msra.mxu0 0
      %1031 = vmatprep.subr.bf16.mxu0 0
      %1032 = vmatpush1.bf16.msra.mxu0 0
      %1033 = vmatprep.mubr.bf16.mxu0 0
      %1034 = vmatmul.mubr.bf16.gmra.mrb[0].mxu0 %v993
      %v1035 = vpop.f32.mrb[0].mxu0
      %v1036 = vadd.f32 0.0, %v1035
      %v1037 = vpop.f32.mrb[0].mxu0
      %v1038 = vadd.f32 0.0, %v1037
      %v1039 = vpop.f32.mrb[0].mxu0
      %v1040 = vpop.f32.mrb[0].mxu0
      %1041 = vdwg.mxu0
      %v1042 = vadd.f32 %v964, %v1036
      %v1043 = vadd.f32 %v965, %v1038
      %v1044 = vld [vmem:[%s4] sm:$0xff]
      %1046 = vset.pattern.permute.xlu0 0
      %1047 = vperm.xlu0 %1046, %v1044
      %v1048 = vpop.permute.xlu0 %1047
      %v1050 = vadd.f32 %v1042, %v1048
      %v1051 = vadd.f32 %v1043, %v1048
      %v1052 = vpack.c.bf16 %v1050, %v1050
      %v1053 = vpack.c.bf16 %v1051, %v1051
      %v1056 = vunpack.c.l.b16 %v1052
      %v1057 = vunpack.c.l.b16 %v1053
      %v1058 = vpack.c.b16 %v1057, %v1056
      %1060 = vst [vmem:[%s318] sm:$0xff] %v1058
      %v1061 = vunpack.c.l.bf16 %v1052
      %v1062 = vunpack.c.l.bf16 %v1053
      %v1063 = vadd.f32 %v1061, %v1062
      %1064 = vadd.xlane.f32.xlu0 %v1063
      %v1065 = vpop.xlane.xlu0 %1064
      %vm1066 = vcmask 7168
      %1067 = vst.msk [vmem:[%s322] sm:$0xff] %vm1066, %v1065
      %v1068 = vmul.f32 %v1061, %v1061
      %v1069 = vmul.f32 %v1062, %v1062
      %v1070 = vadd.f32 %v1068, %v1069
      %1071 = vadd.xlane.f32.xlu0 %v1070
      %v1072 = vpop.xlane.xlu0 %1071
      %1073 = vst.msk [vmem:[%s326] sm:$0xff] %vm1066, %v1072
      %p1074 = scmp.lt.s32.totalorder %s20, 1
      %s1075 = scalar_select %p1074, %s20, 1
      %s1076 = smul.addr %s1075, 2
      %s1077 = smul.addr %s1076, 4
      %s1078 = scalar_lea.vmem %s6, %s1077
      %p1079 = scmp.lt.s32.totalorder %s20, 1
      %s1080 = scalar_select %p1079, %s20, 1
      %s1081 = smul.addr %s1080, 8
      %s1082 = scalar_lea.vmem %s7, %s1081
      %p1083 = scmp.lt.s32.totalorder %s20, 1
      %s1084 = scalar_select %p1083, %s20, 1
      %s1085 = smul.addr %s1084, 8
      %s1086 = scalar_lea.vmem %s8, %s1085
      // Predicated region
      $region45: #{continus_paralle_conv.2} parent=43 // pred_check
        %p1087 = pneg %p169
      $region46: #{continus_paralle_conv.2} parent=43 // pred_check_branch
        %1089 = sbr.rel (%p1087) target = $region48
      $region47: #{continus_paralle_conv.2} parent=43 // pred_region
        _
      $region48: #{continus_paralle_conv.2} parent=43 // pred_fallthru
        _
      // Predicated region
      $region49: #{continus_paralle_conv.2} parent=43 // pred_check
        %p1090 = pneg %p195
      $region50: #{continus_paralle_conv.2} parent=43 // pred_check_branch
        %1092 = sbr.rel (%p1090) target = $region52
      $region51: #{continus_paralle_conv.2} parent=43 // pred_region
        _
      $region52: #{continus_paralle_conv.2} parent=43 // pred_fallthru
        _
      // Predicated region
      $region53: #{continus_paralle_conv.2} parent=43 // pred_check
        %p1093 = pneg %p221
      $region54: #{continus_paralle_conv.2} parent=43 // pred_check_branch
        %1095 = sbr.rel (%p1093) target = $region56
      $region55: #{continus_paralle_conv.2} parent=43 // pred_region
        _
      $region56: #{continus_paralle_conv.2} parent=43 // pred_fallthru
        _
    $region44: #{continus_paralle_conv.2} parent=5 // pred_fallthru
      _
    %p1096 = scmp.le.s32.totalorder 2, %s15
    // Predicated region
    $region57: #{continus_paralle_conv.2} parent=5 // pred_check
      %p1097 = pneg %p1096
    $region58: #{continus_paralle_conv.2} parent=5 // pred_check_branch
      %1099 = sbr.rel (%p1097) target = $region60
    $region59: #{continus_paralle_conv.2} parent=5 // pred_region
      %s1100 = ssub.s32 %s15, 2
      // Predicated region
      $region61: #{continus_paralle_conv.2} parent=59 // pred_check
        %p1101 = pneg %p175
      $region62: #{continus_paralle_conv.2} parent=59 // pred_check_branch
        %1103 = sbr.rel (%p1101) target = $region64
      $region63: #{continus_paralle_conv.2} parent=59 // pred_region
        %p1104 = scmp.lt.s32.totalorder %s21, 1
        %s1105 = scalar_select %p1104, %s21, 1
        %s1106 = smul.addr %s1105, 2
        %s1107 = smul.addr %s1106, 4
        %s1108 = scalar_lea.vmem %s6, %s1107
      $region64: #{continus_paralle_conv.2} parent=59 // pred_fallthru
        _
      // Predicated region
      $region65: #{continus_paralle_conv.2} parent=59 // pred_check
        %p1109 = pneg %p201
      $region66: #{continus_paralle_conv.2} parent=59 // pred_check_branch
        %1111 = sbr.rel (%p1109) target = $region68
      $region67: #{continus_paralle_conv.2} parent=59 // pred_region
        %p1112 = scmp.lt.s32.totalorder %s21, 1
        %s1113 = scalar_select %p1112, %s21, 1
        %s1114 = smul.addr %s1113, 8
        %s1115 = scalar_lea.vmem %s7, %s1114
      $region68: #{continus_paralle_conv.2} parent=59 // pred_fallthru
        _
      // Predicated region
      $region69: #{continus_paralle_conv.2} parent=59 // pred_check
        %p1116 = pneg %p227
      $region70: #{continus_paralle_conv.2} parent=59 // pred_check_branch
        %1118 = sbr.rel (%p1116) target = $region72
      $region71: #{continus_paralle_conv.2} parent=59 // pred_region
        %p1119 = scmp.lt.s32.totalorder %s21, 1
        %s1120 = scalar_select %p1119, %s21, 1
        %s1121 = smul.addr %s1120, 8
        %s1122 = scalar_lea.vmem %s8, %s1121
      $region72: #{continus_paralle_conv.2} parent=59 // pred_fallthru
        _
    $region60: #{continus_paralle_conv.2} parent=5 // pred_fallthru
      _
  $region6: #{continus_paralle_conv.2} parent=0 // loop_footer
    %s19 = sadd.s32 1, %s15
  $region7: #{continus_paralle_conv.2} parent=0 // loop_footer_branch
    %14 = sbr.rel target = $region3
  $region8: #{continus_paralle_conv.2} parent=0 // loop_exit
    _

// kernel: continus_paralle_conv.3
$region0: #{continus_paralle_conv.3}
  #allocation0 [shape = 'u32[]', space=smem, size = 0x4, offset = 0x4, fixed_abs, tag = 'smem constant byte address 0x4 - core index']
  #allocation1 [shape = 'u32[144,128]{1,0:T(1,128)}', space=vmem, size = 0x12000, scoped, tag = 'internal scratch']
  %s0 = inlined_call_operand.vmem [shape: bf16[2,8,256], index: 0, kind: input, shape index: {}]
  %s1 = inlined_call_operand.vmem [shape: f32[8,1], index: 1, kind: input, shape index: {}]
  %s2 = inlined_call_operand.vmem [shape: f32[8,1], index: 2, kind: input, shape index: {}]
  %s3 = inlined_call_operand.vmem [shape: bf16[9,8,8], index: 3, kind: input, shape index: {}]
  %s4 = inlined_call_operand.vmem [shape: f32[8,1], index: 4, kind: input, shape index: {}]
  %s5 = inlined_call_operand.vmem [shape: f32[9,1,256], index: 5, kind: input, shape index: {}]
  %s6 = inlined_call_operand.vmem [shape: f32[2,8,256], index: 6, kind: output, shape index: {}]
  %s7 = sld [smem:[#allocation0]]
  $region57: #{continus_paralle_conv.3} parent=0
    _
  %s9 = ssub.s32 1, %s7
  %s10 = scalar_select 0, %s9, %s7
  loop: start=0, step=1, limit=4
  $region2: #{continus_paralle_conv.3} parent=0 // loop_pre_header
    _
  $region3: #{continus_paralle_conv.3} parent=0 // loop_header
    %s12 = sphi 0, %s16
    %p13 = scmp.ge.s32.totalorder %s12, 4
    %s22 = sphi 0, %s24
    %s25 = sphi 0, %s22
    %s26 = sphi 0, %s25
    %s42 = sphi 0, %s26
    %s46 = sphi 0, %s46
    %s48 = sphi 0, %s46
    %s49 = sphi 0, %s48
    %s63 = sphi 0, %s49
    %s67 = sphi 0, %s67
    %s69 = sphi 0, %s67
    %s70 = sphi 0, %s69
    %s84 = sphi 0, %s70
    %s88 = sphi 0, %s88
    %s90 = sphi 0, %s88
    %s91 = sphi 0, %s90
    %s105 = sphi 0, %s91
    %s109 = sphi 0, %s109
    %s111 = sphi 0, %s109
    %s112 = sphi 0, %s111
    %s126 = sphi 0, %s112
    %s130 = sphi 0, %s130
    %s132 = sphi 0, %s130
    %s133 = sphi 0, %s132
    %s147 = sphi 0, %s133
    %s153 = sphi 0, %s155
    %s156 = sphi 0, %s153
    %s157 = sphi 0, %s156
    %s173 = sphi 0, %s157
  $region4: #{continus_paralle_conv.3} parent=0 // loop_header_branch
    %15 = sbr.rel (%p13) target = $region8
  $region5: #{continus_paralle_conv.3} parent=0 // loop_body
    %s17 = ssub.s32 %s12, 1
    %s18 = ssub.s32 %s12, 2
    %s19 = sadd.s32 %s12, 1
    %s20 = ssub.s32 %s12, %s19
    %p21 = scmp.eq.s32.totalorder %s20, 0
    %s23 = sadd.s32 %s22, 1
    %s24 = scalar_select %p21, %s22, %s23
    %p27 = pneg %p21
    %p28 = scmp.eq.s32.totalorder %s12, 1
    %p29 = por %p27, %p28
    %p30 = scmp.ne.s32.totalorder %s22, %s25
    %p31 = scmp.eq.s32.totalorder %s12, 0
    %p32 = por %p30, %p31
    %p33 = scmp.ne.s32.totalorder %s22, %s25
    %p34 = scmp.eq.s32.totalorder %s17, 1
    %p35 = por %p33, %p34
    %p36 = scmp.ne.s32.totalorder %s25, %s26
    %p37 = scmp.eq.s32.totalorder %s17, 0
    %p38 = por %p36, %p37
    %p39 = scmp.ne.s32.totalorder %s25, %s26
    %p40 = scmp.eq.s32.totalorder %s18, 1
    %p41 = por %p39, %p40
    %p43 = scmp.ne.s32.totalorder %s26, %s42
    %p44 = scmp.eq.s32.totalorder %s18, 0
    %p45 = por %p43, %p44
    %s47 = sadd.s32 %s46, 1
    %p50 = scmp.eq.s32.totalorder %s12, 1
    %p51 = scmp.ne.s32.totalorder %s46, %s48
    %p52 = scmp.eq.s32.totalorder %s12, 0
    %p53 = por %p51, %p52
    %p54 = scmp.ne.s32.totalorder %s46, %s48
    %p55 = scmp.eq.s32.totalorder %s17, 1
    %p56 = por %p54, %p55
    %p57 = scmp.ne.s32.totalorder %s48, %s49
    %p58 = scmp.eq.s32.totalorder %s17, 0
    %p59 = por %p57, %p58
    %p60 = scmp.ne.s32.totalorder %s48, %s49
    %p61 = scmp.eq.s32.totalorder %s18, 1
    %p62 = por %p60, %p61
    %p64 = scmp.ne.s32.totalorder %s49, %s63
    %p65 = scmp.eq.s32.totalorder %s18, 0
    %p66 = por %p64, %p65
    %s68 = sadd.s32 %s67, 1
    %p71 = scmp.eq.s32.totalorder %s12, 1
    %p72 = scmp.ne.s32.totalorder %s67, %s69
    %p73 = scmp.eq.s32.totalorder %s12, 0
    %p74 = por %p72, %p73
    %p75 = scmp.ne.s32.totalorder %s67, %s69
    %p76 = scmp.eq.s32.totalorder %s17, 1
    %p77 = por %p75, %p76
    %p78 = scmp.ne.s32.totalorder %s69, %s70
    %p79 = scmp.eq.s32.totalorder %s17, 0
    %p80 = por %p78, %p79
    %p81 = scmp.ne.s32.totalorder %s69, %s70
    %p82 = scmp.eq.s32.totalorder %s18, 1
    %p83 = por %p81, %p82
    %p85 = scmp.ne.s32.totalorder %s70, %s84
    %p86 = scmp.eq.s32.totalorder %s18, 0
    %p87 = por %p85, %p86
    %s89 = sadd.s32 %s88, 1
    %p92 = scmp.eq.s32.totalorder %s12, 1
    %p93 = scmp.ne.s32.totalorder %s88, %s90
    %p94 = scmp.eq.s32.totalorder %s12, 0
    %p95 = por %p93, %p94
    %p96 = scmp.ne.s32.totalorder %s88, %s90
    %p97 = scmp.eq.s32.totalorder %s17, 1
    %p98 = por %p96, %p97
    %p99 = scmp.ne.s32.totalorder %s90, %s91
    %p100 = scmp.eq.s32.totalorder %s17, 0
    %p101 = por %p99, %p100
    %p102 = scmp.ne.s32.totalorder %s90, %s91
    %p103 = scmp.eq.s32.totalorder %s18, 1
    %p104 = por %p102, %p103
    %p106 = scmp.ne.s32.totalorder %s91, %s105
    %p107 = scmp.eq.s32.totalorder %s18, 0
    %p108 = por %p106, %p107
    %s110 = sadd.s32 %s109, 1
    %p113 = scmp.eq.s32.totalorder %s12, 1
    %p114 = scmp.ne.s32.totalorder %s109, %s111
    %p115 = scmp.eq.s32.totalorder %s12, 0
    %p116 = por %p114, %p115
    %p117 = scmp.ne.s32.totalorder %s109, %s111
    %p118 = scmp.eq.s32.totalorder %s17, 1
    %p119 = por %p117, %p118
    %p120 = scmp.ne.s32.totalorder %s111, %s112
    %p121 = scmp.eq.s32.totalorder %s17, 0
    %p122 = por %p120, %p121
    %p123 = scmp.ne.s32.totalorder %s111, %s112
    %p124 = scmp.eq.s32.totalorder %s18, 1
    %p125 = por %p123, %p124
    %p127 = scmp.ne.s32.totalorder %s112, %s126
    %p128 = scmp.eq.s32.totalorder %s18, 0
    %p129 = por %p127, %p128
    %s131 = sadd.s32 %s130, 1
    %p134 = scmp.eq.s32.totalorder %s12, 1
    %p135 = scmp.ne.s32.totalorder %s130, %s132
    %p136 = scmp.eq.s32.totalorder %s12, 0
    %p137 = por %p135, %p136
    %p138 = scmp.ne.s32.totalorder %s130, %s132
    %p139 = scmp.eq.s32.totalorder %s17, 1
    %p140 = por %p138, %p139
    %p141 = scmp.ne.s32.totalorder %s132, %s133
    %p142 = scmp.eq.s32.totalorder %s17, 0
    %p143 = por %p141, %p142
    %p144 = scmp.ne.s32.totalorder %s132, %s133
    %p145 = scmp.eq.s32.totalorder %s18, 1
    %p146 = por %p144, %p145
    %p148 = scmp.ne.s32.totalorder %s133, %s147
    %p149 = scmp.eq.s32.totalorder %s18, 0
    %p150 = por %p148, %p149
    %s151 = ssub.s32 %s12, %s19
    %p152 = scmp.eq.s32.totalorder %s151, 0
    %s154 = sadd.s32 %s153, 1
    %s155 = scalar_select %p152, %s153, %s154
    %p158 = pneg %p152
    %p159 = scmp.eq.s32.totalorder %s12, 1
    %p160 = por %p158, %p159
    %p161 = scmp.ne.s32.totalorder %s153, %s156
    %p162 = scmp.eq.s32.totalorder %s12, 0
    %p163 = por %p161, %p162
    %p164 = scmp.ne.s32.totalorder %s153, %s156
    %p165 = scmp.eq.s32.totalorder %s17, 1
    %p166 = por %p164, %p165
    %p167 = scmp.ne.s32.totalorder %s156, %s157
    %p168 = scmp.eq.s32.totalorder %s17, 0
    %p169 = por %p167, %p168
    %p170 = scmp.ne.s32.totalorder %s156, %s157
    %p171 = scmp.eq.s32.totalorder %s18, 1
    %p172 = por %p170, %p171
    %p174 = scmp.ne.s32.totalorder %s157, %s173
    %p175 = scmp.eq.s32.totalorder %s18, 0
    %p176 = por %p174, %p175
    %p177 = scmp.le.s32.totalorder 1, %s12
    %p178 = scmp.lt.s32.totalorder %s12, 3
    %p179 = pnand %p177, %p178
    %p180 = pneg %p179
    // Predicated region
    $region9: #{continus_paralle_conv.3} parent=5 // pred_check
      _
    $region10: #{continus_paralle_conv.3} parent=5 // pred_check_branch
      %182 = sbr.rel (%p179) target = $region12
    $region11: #{continus_paralle_conv.3} parent=5 // pred_region
      %s183 = ssub.s32 %s12, 1
      // Predicated region
      $region13: #{continus_paralle_conv.3} parent=11 // pred_check
        %p184 = pneg %p59
      $region14: #{continus_paralle_conv.3} parent=11 // pred_check_branch
        %186 = sbr.rel (%p184) target = $region16
      $region15: #{continus_paralle_conv.3} parent=11 // pred_region
        _
      $region16: #{continus_paralle_conv.3} parent=11 // pred_fallthru
        _
      // Predicated region
      $region17: #{continus_paralle_conv.3} parent=11 // pred_check
        %p187 = pneg %p80
      $region18: #{continus_paralle_conv.3} parent=11 // pred_check_branch
        %189 = sbr.rel (%p187) target = $region20
      $region19: #{continus_paralle_conv.3} parent=11 // pred_region
        _
      $region20: #{continus_paralle_conv.3} parent=11 // pred_fallthru
        _
      // Predicated region
      $region21: #{continus_paralle_conv.3} parent=11 // pred_check
        %p190 = pneg %p101
      $region22: #{continus_paralle_conv.3} parent=11 // pred_check_branch
        %192 = sbr.rel (%p190) target = $region24
      $region23: #{continus_paralle_conv.3} parent=11 // pred_region
        _
      $region24: #{continus_paralle_conv.3} parent=11 // pred_fallthru
        _
      // Predicated region
      $region25: #{continus_paralle_conv.3} parent=11 // pred_check
        %p193 = pneg %p122
      $region26: #{continus_paralle_conv.3} parent=11 // pred_check_branch
        %195 = sbr.rel (%p193) target = $region28
      $region27: #{continus_paralle_conv.3} parent=11 // pred_region
        _
      $region28: #{continus_paralle_conv.3} parent=11 // pred_fallthru
        _
      // Predicated region
      $region29: #{continus_paralle_conv.3} parent=11 // pred_check
        %p196 = pneg %p143
      $region30: #{continus_paralle_conv.3} parent=11 // pred_check_branch
        %198 = sbr.rel (%p196) target = $region32
      $region31: #{continus_paralle_conv.3} parent=11 // pred_region
        _
      $region32: #{continus_paralle_conv.3} parent=11 // pred_fallthru
        _
    $region12: #{continus_paralle_conv.3} parent=5 // pred_fallthru
      _
    %p199 = scmp.lt.s32.totalorder %s12, 2
    // Predicated region
    $region33: #{continus_paralle_conv.3} parent=5 // pred_check
      %p200 = pneg %p199
    $region34: #{continus_paralle_conv.3} parent=5 // pred_check_branch
      %202 = sbr.rel (%p200) target = $region36
    $region35: #{continus_paralle_conv.3} parent=5 // pred_region
      // Predicated region
      $region37: #{continus_paralle_conv.3} parent=35 // pred_check
        %p203 = pneg %p32
      $region38: #{continus_paralle_conv.3} parent=35 // pred_check_branch
        %205 = sbr.rel (%p203) target = $region40
      $region39: #{continus_paralle_conv.3} parent=35 // pred_region
        %p206 = scmp.lt.s32.totalorder %s12, 1
        %s207 = scalar_select %p206, %s12, 1
        %s208 = smul.addr %s207, 2
        %s209 = smul.addr %s208, 4
        %s210 = scalar_lea.vmem %s0, %s209
      $region40: #{continus_paralle_conv.3} parent=35 // pred_fallthru
        _
    $region36: #{continus_paralle_conv.3} parent=5 // pred_fallthru
      _
    %p211 = scmp.le.s32.totalorder 1, %s12
    %p212 = scmp.lt.s32.totalorder %s12, 3
    %p213 = pnand %p211, %p212
    %p214 = pneg %p213
    // Predicated region
    $region41: #{continus_paralle_conv.3} parent=5 // pred_check
      _
    $region42: #{continus_paralle_conv.3} parent=5 // pred_check_branch
      %216 = sbr.rel (%p213) target = $region44
    $region43: #{continus_paralle_conv.3} parent=5 // pred_region
      %s217 = ssub.s32 %s12, 1
      %p218 = scmp.lt.s32.totalorder %s17, 1
      %s219 = scalar_select %p218, %s17, 1
      %s220 = smul.addr %s219, 2
      %s221 = smul.addr %s220, 4
      %s222 = scalar_lea.vmem %s0, %s221
      %p223 = pneg %p38
      %p224 = pneg %p35
      %p225 = pneg %p59
      %p226 = pneg %p56
      %p227 = pneg %p80
      %p228 = pneg %p77
      %p229 = pneg %p101
      %p230 = pneg %p98
      %p231 = pneg %p122
      %p232 = pneg %p119
      %p233 = pneg %p143
      %p234 = pneg %p140
      %p235 = pneg %p169
      %p236 = pneg %p166
      %p237 = scmp.lt.s32.totalorder %s17, 1
      %s238 = scalar_select %p237, %s17, 1
      %s239 = smul.addr %s238, 2
      %s240 = smul.addr %s239, 8
      %s241 = scalar_lea.vmem %s6, %s240
      %p242 = scmp.lt.s32.totalorder %s17, 1
      %s243 = scalar_select %p242, %s17, 1
      %s244 = smul.addr %s243, 2
      %s245 = smul.addr %s244, 4
      %s246 = scalar_lea.vmem %s0, %s245
      %p247 = scmp.lt.s32.totalorder %s17, 1
      %s248 = scalar_select %p247, %s17, 1
      %s249 = smul.addr %s248, 2
      %s250 = smul.addr %s249, 8
      %s251 = scalar_lea.vmem %s6, %s250
      %v253 = vld [vmem:[%s246] sm:$0xff]
      %v254 = vunpack.c.l.bf16 %v253
      %v255 = vunpack.c.h.bf16 %v253
      %v256 = vld [vmem:[%s1] sm:$0xff]
      %258 = vset.pattern.permute.xlu0 0
      %259 = vperm.xlu0 %258, %v256
      %v260 = vpop.permute.xlu0 %259
      %v262 = vmul.f32 %v254, %v260
      %v263 = vmul.f32 %v255, %v260
      %v264 = vld [vmem:[%s2] sm:$0xff]
      %266 = vset.pattern.permute.xlu0 0
      %267 = vperm.xlu0 %266, %v264
      %v268 = vpop.permute.xlu0 %267
      %v270 = vadd.f32 %v262, %v268
      %v271 = vadd.f32 %v263, %v268
      %v272 = vxor.u32 %v270, 2147483648
      %v273 = vxor.u32 %v271, 2147483648
      %v274 = vmul.f32 %v272, 1.442695
      %v275 = vpow.pop %v274
      %v276 = vmul.f32 %v273, 1.442695
      %v277 = vpow.pop %v276
      %v278 = vadd.f32 %v275, 1.0
      %v279 = vadd.f32 %v277, 1.0
      %v280 = vrcp.pop %v278
      %v281 = vmul.f32 1.0, %v280
      %v282 = vrcp.pop %v279
      %v283 = vmul.f32 1.0, %v282
      %284 = vrot.lane.b32.xlu0 %v281, 17
      %v285 = vpop.permute.xlu0 %284
      %286 = vrot.lane.b32.xlu0 %v283, 17
      %v287 = vpop.permute.xlu0 %286
      %v288 = vlaneseq
      %v289 = vand.u32 %v288, 127
      %vm290 = vcmp.lt.s32.totalorder %v289, 17
      %v291 = vsel %vm290, %v285, %v287
      %v292 = vsel %vm290, %v287, %v285
      %v293 = vld [vmem:[%s5] sm:$0x3]
      %v295 = vlaneseq
      %v296 = vshrl.u32 %v295, 7
      %v297 = vsub.s32 0, %v296
      %v298 = vrot.slane %v293, %v297
      %v299 = vlaneseq
      %v300 = vshrl.u32 %v299, 7
      %v301 = vsub.s32 1, %v300
      %v302 = vrot.slane %v293, %v301
      %v305 = vmul.f32 %v292, %v298
      %v306 = vmul.f32 %v291, %v302
      %v307 = vld [vmem:[%s3] sm:$0xf]
      %v308 = vpack.c.bf16 %v305, %v305
      %v309 = vpack.c.bf16 %v306, %v306
      %310 = vrot.lane.b32.xlu0 %v281, 16
      %v311 = vpop.permute.xlu0 %310
      %312 = vrot.lane.b32.xlu0 %v283, 16
      %v313 = vpop.permute.xlu0 %312
      %vm314 = vcmp.lt.s32.totalorder %v289, 16
      %v315 = vsel %vm314, %v311, %v313
      %v316 = vsel %vm314, %v313, %v311
      %s317 = scalar_lea.vmem %s5, 2
      %v318 = vld [vmem:[%s317] sm:$0x3]
      %v320 = vlaneseq
      %v321 = vshrl.u32 %v320, 7
      %v322 = vsub.s32 0, %v321
      %v323 = vrot.slane %v318, %v322
      %v324 = vlaneseq
      %v325 = vshrl.u32 %v324, 7
      %v326 = vsub.s32 1, %v325
      %v327 = vrot.slane %v318, %v326
      %v330 = vmul.f32 %v316, %v323
      %v331 = vmul.f32 %v315, %v327
      %s332 = scalar_lea.vmem %s3, 4
      %v333 = vld [vmem:[%s332] sm:$0xf]
      %v334 = vpack.c.bf16 %v330, %v330
      %v335 = vpack.c.bf16 %v331, %v331
      %vm336 = vcmask 64512
      %v338 = vsel %vm336, %v333, 0
      %vm340 = vcmask 1043456
      %v342 = vsel %vm340, %v334, 0
      %v345 = vsel %vm340, %v335, 0
      %347 = vmatprep.subr.bf16.mxu0 %v345
      %348 = vmatpush1.bf16.msra.mxu0 %v342
      %349 = vmatprep.subr.bf16.mxu0 0
      %350 = vmatpush1.bf16.msra.mxu0 0
      %351 = vmatprep.subr.bf16.mxu0 0
      %352 = vmatpush1.bf16.msra.mxu0 0
      %353 = vmatprep.subr.bf16.mxu0 0
      %354 = vmatpush1.bf16.msra.mxu0 0
      %355 = vmatprep.subr.bf16.mxu0 0
      %356 = vmatpush1.bf16.msra.mxu0 0
      %357 = vmatprep.subr.bf16.mxu0 0
      %358 = vmatpush1.bf16.msra.mxu0 0
      %359 = vmatprep.subr.bf16.mxu0 0
      %360 = vmatpush1.bf16.msra.mxu0 0
      %361 = vmatprep.subr.bf16.mxu0 0
      %362 = vmatpush1.bf16.msra.mxu0 0
      %363 = vmatprep.subr.bf16.mxu0 0
      %364 = vmatpush1.bf16.msra.mxu0 0
      %365 = vmatprep.subr.bf16.mxu0 0
      %366 = vmatpush1.bf16.msra.mxu0 0
      %367 = vmatprep.subr.bf16.mxu0 0
      %368 = vmatpush1.bf16.msra.mxu0 0
      %369 = vmatprep.subr.bf16.mxu0 0
      %370 = vmatpush1.bf16.msra.mxu0 0
      %371 = vmatprep.subr.bf16.mxu0 0
      %372 = vmatpush1.bf16.msra.mxu0 0
      %373 = vmatprep.subr.bf16.mxu0 0
      %374 = vmatpush1.bf16.msra.mxu0 0
      %375 = vmatprep.subr.bf16.mxu0 0
      %376 = vmatpush1.bf16.msra.mxu0 0
      %377 = vmatprep.subr.bf16.mxu0 0
      %378 = vmatpush1.bf16.msra.mxu0 0
      %379 = vmatprep.mubr.bf16.mxu0 0
      %380 = vmatmul.mubr.bf16.gmra.mrb[0].mxu0 %v338
      %v381 = vpop.f32.mrb[0].mxu0
      %v382 = vadd.f32 0.0, %v381
      %v383 = vpop.f32.mrb[0].mxu0
      %v384 = vadd.f32 0.0, %v383
      %v385 = vpop.f32.mrb[0].mxu0
      %v386 = vpop.f32.mrb[0].mxu0
      %387 = vdwg.mxu0
      %v389 = vsel %vm336, %v307, 0
      %v392 = vsel %vm340, %v308, 0
      %v395 = vsel %vm340, %v309, 0
      %397 = vmatprep.subr.bf16.mxu0 %v395
      %398 = vmatpush1.bf16.msra.mxu0 %v392
      %399 = vmatprep.subr.bf16.mxu0 0
      %400 = vmatpush1.bf16.msra.mxu0 0
      %401 = vmatprep.subr.bf16.mxu0 0
      %402 = vmatpush1.bf16.msra.mxu0 0
      %403 = vmatprep.subr.bf16.mxu0 0
      %404 = vmatpush1.bf16.msra.mxu0 0
      %405 = vmatprep.subr.bf16.mxu0 0
      %406 = vmatpush1.bf16.msra.mxu0 0
      %407 = vmatprep.subr.bf16.mxu0 0
      %408 = vmatpush1.bf16.msra.mxu0 0
      %409 = vmatprep.subr.bf16.mxu0 0
      %410 = vmatpush1.bf16.msra.mxu0 0
      %411 = vmatprep.subr.bf16.mxu0 0
      %412 = vmatpush1.bf16.msra.mxu0 0
      %413 = vmatprep.subr.bf16.mxu0 0
      %414 = vmatpush1.bf16.msra.mxu0 0
      %415 = vmatprep.subr.bf16.mxu0 0
      %416 = vmatpush1.bf16.msra.mxu0 0
      %417 = vmatprep.subr.bf16.mxu0 0
      %418 = vmatpush1.bf16.msra.mxu0 0
      %419 = vmatprep.subr.bf16.mxu0 0
      %420 = vmatpush1.bf16.msra.mxu0 0
      %421 = vmatprep.subr.bf16.mxu0 0
      %422 = vmatpush1.bf16.msra.mxu0 0
      %423 = vmatprep.subr.bf16.mxu0 0
      %424 = vmatpush1.bf16.msra.mxu0 0
      %425 = vmatprep.subr.bf16.mxu0 0
      %426 = vmatpush1.bf16.msra.mxu0 0
      %427 = vmatprep.subr.bf16.mxu0 0
      %428 = vmatpush1.bf16.msra.mxu0 0
      %429 = vmatprep.mubr.bf16.mxu0 0
      %430 = vmatmul.mubr.bf16.gmra.mrb[0].mxu0 %v389
      %v431 = vpop.f32.mrb[0].mxu0
      %v432 = vadd.f32 %v382, %v431
      %v433 = vpop.f32.mrb[0].mxu0
      %v434 = vadd.f32 %v384, %v433
      %v435 = vpop.f32.mrb[0].mxu0
      %v436 = vpop.f32.mrb[0].mxu0
      %437 = vdwg.mxu0
      %438 = vrot.lane.b32.xlu0 %v281, 15
      %v439 = vpop.permute.xlu0 %438
      %440 = vrot.lane.b32.xlu0 %v283, 15
      %v441 = vpop.permute.xlu0 %440
      %vm442 = vcmp.lt.s32.totalorder %v289, 15
      %v443 = vsel %vm442, %v439, %v441
      %v444 = vsel %vm442, %v441, %v439
      %s445 = scalar_lea.vmem %s5, 4
      %v446 = vld [vmem:[%s445] sm:$0x3]
      %v448 = vlaneseq
      %v449 = vshrl.u32 %v448, 7
      %v450 = vsub.s32 0, %v449
      %v451 = vrot.slane %v446, %v450
      %v452 = vlaneseq
      %v453 = vshrl.u32 %v452, 7
      %v454 = vsub.s32 1, %v453
      %v455 = vrot.slane %v446, %v454
      %v458 = vmul.f32 %v444, %v451
      %v459 = vmul.f32 %v443, %v455
      %s460 = scalar_lea.vmem %s3, 8
      %v461 = vld [vmem:[%s460] sm:$0xf]
      %v462 = vpack.c.bf16 %v458, %v458
      %v463 = vpack.c.bf16 %v459, %v459
      %v465 = vsel %vm336, %v461, 0
      %v468 = vsel %vm340, %v462, 0
      %v471 = vsel %vm340, %v463, 0
      %473 = vmatprep.subr.bf16.mxu0 %v471
      %474 = vmatpush1.bf16.msra.mxu0 %v468
      %475 = vmatprep.subr.bf16.mxu0 0
      %476 = vmatpush1.bf16.msra.mxu0 0
      %477 = vmatprep.subr.bf16.mxu0 0
      %478 = vmatpush1.bf16.msra.mxu0 0
      %479 = vmatprep.subr.bf16.mxu0 0
      %480 = vmatpush1.bf16.msra.mxu0 0
      %481 = vmatprep.subr.bf16.mxu0 0
      %482 = vmatpush1.bf16.msra.mxu0 0
      %483 = vmatprep.subr.bf16.mxu0 0
      %484 = vmatpush1.bf16.msra.mxu0 0
      %485 = vmatprep.subr.bf16.mxu0 0
      %486 = vmatpush1.bf16.msra.mxu0 0
      %487 = vmatprep.subr.bf16.mxu0 0
      %488 = vmatpush1.bf16.msra.mxu0 0
      %489 = vmatprep.subr.bf16.mxu0 0
      %490 = vmatpush1.bf16.msra.mxu0 0
      %491 = vmatprep.subr.bf16.mxu0 0
      %492 = vmatpush1.bf16.msra.mxu0 0
      %493 = vmatprep.subr.bf16.mxu0 0
      %494 = vmatpush1.bf16.msra.mxu0 0
      %495 = vmatprep.subr.bf16.mxu0 0
      %496 = vmatpush1.bf16.msra.mxu0 0
      %497 = vmatprep.subr.bf16.mxu0 0
      %498 = vmatpush1.bf16.msra.mxu0 0
      %499 = vmatprep.subr.bf16.mxu0 0
      %500 = vmatpush1.bf16.msra.mxu0 0
      %501 = vmatprep.subr.bf16.mxu0 0
      %502 = vmatpush1.bf16.msra.mxu0 0
      %503 = vmatprep.subr.bf16.mxu0 0
      %504 = vmatpush1.bf16.msra.mxu0 0
      %505 = vmatprep.mubr.bf16.mxu0 0
      %506 = vmatmul.mubr.bf16.gmra.mrb[0].mxu0 %v465
      %v507 = vpop.f32.mrb[0].mxu0
      %v508 = vadd.f32 0.0, %v507
      %v509 = vpop.f32.mrb[0].mxu0
      %v510 = vadd.f32 0.0, %v509
      %v511 = vpop.f32.mrb[0].mxu0
      %v512 = vpop.f32.mrb[0].mxu0
      %513 = vdwg.mxu0
      %v514 = vadd.f32 %v432, %v508
      %v515 = vadd.f32 %v434, %v510
      %516 = vrot.lane.b32.xlu0 %v281, 1
      %v517 = vpop.permute.xlu0 %516
      %518 = vrot.lane.b32.xlu0 %v283, 1
      %v519 = vpop.permute.xlu0 %518
      %vm520 = vcmp.lt.s32.totalorder %v289, 1
      %v521 = vsel %vm520, %v517, %v519
      %v522 = vsel %vm520, %v519, %v517
      %s523 = scalar_lea.vmem %s5, 6
      %v524 = vld [vmem:[%s523] sm:$0x3]
      %v526 = vlaneseq
      %v527 = vshrl.u32 %v526, 7
      %v528 = vsub.s32 0, %v527
      %v529 = vrot.slane %v524, %v528
      %v530 = vlaneseq
      %v531 = vshrl.u32 %v530, 7
      %v532 = vsub.s32 1, %v531
      %v533 = vrot.slane %v524, %v532
      %v536 = vmul.f32 %v522, %v529
      %v537 = vmul.f32 %v521, %v533
      %s538 = scalar_lea.vmem %s3, 12
      %v539 = vld [vmem:[%s538] sm:$0xf]
      %v540 = vpack.c.bf16 %v536, %v536
      %v541 = vpack.c.bf16 %v537, %v537
      %v543 = vsel %vm336, %v539, 0
      %v546 = vsel %vm340, %v540, 0
      %v549 = vsel %vm340, %v541, 0
      %551 = vmatprep.subr.bf16.mxu0 %v549
      %552 = vmatpush1.bf16.msra.mxu0 %v546
      %553 = vmatprep.subr.bf16.mxu0 0
      %554 = vmatpush1.bf16.msra.mxu0 0
      %555 = vmatprep.subr.bf16.mxu0 0
      %556 = vmatpush1.bf16.msra.mxu0 0
      %557 = vmatprep.subr.bf16.mxu0 0
      %558 = vmatpush1.bf16.msra.mxu0 0
      %559 = vmatprep.subr.bf16.mxu0 0
      %560 = vmatpush1.bf16.msra.mxu0 0
      %561 = vmatprep.subr.bf16.mxu0 0
      %562 = vmatpush1.bf16.msra.mxu0 0
      %563 = vmatprep.subr.bf16.mxu0 0
      %564 = vmatpush1.bf16.msra.mxu0 0
      %565 = vmatprep.subr.bf16.mxu0 0
      %566 = vmatpush1.bf16.msra.mxu0 0
      %567 = vmatprep.subr.bf16.mxu0 0
      %568 = vmatpush1.bf16.msra.mxu0 0
      %569 = vmatprep.subr.bf16.mxu0 0
      %570 = vmatpush1.bf16.msra.mxu0 0
      %571 = vmatprep.subr.bf16.mxu0 0
      %572 = vmatpush1.bf16.msra.mxu0 0
      %573 = vmatprep.subr.bf16.mxu0 0
      %574 = vmatpush1.bf16.msra.mxu0 0
      %575 = vmatprep.subr.bf16.mxu0 0
      %576 = vmatpush1.bf16.msra.mxu0 0
      %577 = vmatprep.subr.bf16.mxu0 0
      %578 = vmatpush1.bf16.msra.mxu0 0
      %579 = vmatprep.subr.bf16.mxu0 0
      %580 = vmatpush1.bf16.msra.mxu0 0
      %581 = vmatprep.subr.bf16.mxu0 0
      %582 = vmatpush1.bf16.msra.mxu0 0
      %583 = vmatprep.mubr.bf16.mxu0 0
      %584 = vmatmul.mubr.bf16.gmra.mrb[0].mxu0 %v543
      %v585 = vpop.f32.mrb[0].mxu0
      %v586 = vadd.f32 0.0, %v585
      %v587 = vpop.f32.mrb[0].mxu0
      %v588 = vadd.f32 0.0, %v587
      %v589 = vpop.f32.mrb[0].mxu0
      %v590 = vpop.f32.mrb[0].mxu0
      %591 = vdwg.mxu0
      %v592 = vadd.f32 %v514, %v586
      %v593 = vadd.f32 %v515, %v588
      %s594 = scalar_lea.vmem %s3, 16
      %v595 = vld [vmem:[%s594] sm:$0xf]
      %v596 = vpack.c.bf16 %v281, %v281
      %v597 = vpack.c.bf16 %v283, %v283
      %v599 = vsel %vm336, %v595, 0
      %v602 = vsel %vm340, %v596, 0
      %v605 = vsel %vm340, %v597, 0
      %607 = vmatprep.subr.bf16.mxu0 %v605
      %608 = vmatpush1.bf16.msra.mxu0 %v602
      %609 = vmatprep.subr.bf16.mxu0 0
      %610 = vmatpush1.bf16.msra.mxu0 0
      %611 = vmatprep.subr.bf16.mxu0 0
      %612 = vmatpush1.bf16.msra.mxu0 0
      %613 = vmatprep.subr.bf16.mxu0 0
      %614 = vmatpush1.bf16.msra.mxu0 0
      %615 = vmatprep.subr.bf16.mxu0 0
      %616 = vmatpush1.bf16.msra.mxu0 0
      %617 = vmatprep.subr.bf16.mxu0 0
      %618 = vmatpush1.bf16.msra.mxu0 0
      %619 = vmatprep.subr.bf16.mxu0 0
      %620 = vmatpush1.bf16.msra.mxu0 0
      %621 = vmatprep.subr.bf16.mxu0 0
      %622 = vmatpush1.bf16.msra.mxu0 0
      %623 = vmatprep.subr.bf16.mxu0 0
      %624 = vmatpush1.bf16.msra.mxu0 0
      %625 = vmatprep.subr.bf16.mxu0 0
      %626 = vmatpush1.bf16.msra.mxu0 0
      %627 = vmatprep.subr.bf16.mxu0 0
      %628 = vmatpush1.bf16.msra.mxu0 0
      %629 = vmatprep.subr.bf16.mxu0 0
      %630 = vmatpush1.bf16.msra.mxu0 0
      %631 = vmatprep.subr.bf16.mxu0 0
      %632 = vmatpush1.bf16.msra.mxu0 0
      %633 = vmatprep.subr.bf16.mxu0 0
      %634 = vmatpush1.bf16.msra.mxu0 0
      %635 = vmatprep.subr.bf16.mxu0 0
      %636 = vmatpush1.bf16.msra.mxu0 0
      %637 = vmatprep.subr.bf16.mxu0 0
      %638 = vmatpush1.bf16.msra.mxu0 0
      %639 = vmatprep.mubr.bf16.mxu0 0
      %640 = vmatmul.mubr.bf16.gmra.mrb[0].mxu0 %v599
      %v641 = vpop.f32.mrb[0].mxu0
      %v642 = vadd.f32 0.0, %v641
      %v643 = vpop.f32.mrb[0].mxu0
      %v644 = vadd.f32 0.0, %v643
      %v645 = vpop.f32.mrb[0].mxu0
      %v646 = vpop.f32.mrb[0].mxu0
      %647 = vdwg.mxu0
      %v648 = vadd.f32 %v592, %v642
      %v649 = vadd.f32 %v593, %v644
      %650 = vrot.lane.b32.xlu0 %v281, 127
      %v651 = vpop.permute.xlu0 %650
      %652 = vrot.lane.b32.xlu0 %v283, 127
      %v653 = vpop.permute.xlu0 %652
      %vm654 = vcmp.lt.s32.totalorder %v289, 127
      %v655 = vsel %vm654, %v651, %v653
      %v656 = vsel %vm654, %v653, %v651
      %s657 = scalar_lea.vmem %s5, 10
      %v658 = vld [vmem:[%s657] sm:$0x3]
      %v660 = vlaneseq
      %v661 = vshrl.u32 %v660, 7
      %v662 = vsub.s32 0, %v661
      %v663 = vrot.slane %v658, %v662
      %v664 = vlaneseq
      %v665 = vshrl.u32 %v664, 7
      %v666 = vsub.s32 1, %v665
      %v667 = vrot.slane %v658, %v666
      %v670 = vmul.f32 %v655, %v663
      %v671 = vmul.f32 %v656, %v667
      %s672 = scalar_lea.vmem %s3, 20
      %v673 = vld [vmem:[%s672] sm:$0xf]
      %v674 = vpack.c.bf16 %v670, %v670
      %v675 = vpack.c.bf16 %v671, %v671
      %v677 = vsel %vm336, %v673, 0
      %v680 = vsel %vm340, %v674, 0
      %v683 = vsel %vm340, %v675, 0
      %685 = vmatprep.subr.bf16.mxu0 %v683
      %686 = vmatpush1.bf16.msra.mxu0 %v680
      %687 = vmatprep.subr.bf16.mxu0 0
      %688 = vmatpush1.bf16.msra.mxu0 0
      %689 = vmatprep.subr.bf16.mxu0 0
      %690 = vmatpush1.bf16.msra.mxu0 0
      %691 = vmatprep.subr.bf16.mxu0 0
      %692 = vmatpush1.bf16.msra.mxu0 0
      %693 = vmatprep.subr.bf16.mxu0 0
      %694 = vmatpush1.bf16.msra.mxu0 0
      %695 = vmatprep.subr.bf16.mxu0 0
      %696 = vmatpush1.bf16.msra.mxu0 0
      %697 = vmatprep.subr.bf16.mxu0 0
      %698 = vmatpush1.bf16.msra.mxu0 0
      %699 = vmatprep.subr.bf16.mxu0 0
      %700 = vmatpush1.bf16.msra.mxu0 0
      %701 = vmatprep.subr.bf16.mxu0 0
      %702 = vmatpush1.bf16.msra.mxu0 0
      %703 = vmatprep.subr.bf16.mxu0 0
      %704 = vmatpush1.bf16.msra.mxu0 0
      %705 = vmatprep.subr.bf16.mxu0 0
      %706 = vmatpush1.bf16.msra.mxu0 0
      %707 = vmatprep.subr.bf16.mxu0 0
      %708 = vmatpush1.bf16.msra.mxu0 0
      %709 = vmatprep.subr.bf16.mxu0 0
      %710 = vmatpush1.bf16.msra.mxu0 0
      %711 = vmatprep.subr.bf16.mxu0 0
      %712 = vmatpush1.bf16.msra.mxu0 0
      %713 = vmatprep.subr.bf16.mxu0 0
      %714 = vmatpush1.bf16.msra.mxu0 0
      %715 = vmatprep.subr.bf16.mxu0 0
      %716 = vmatpush1.bf16.msra.mxu0 0
      %717 = vmatprep.mubr.bf16.mxu0 0
      %718 = vmatmul.mubr.bf16.gmra.mrb[0].mxu0 %v677
      %v719 = vpop.f32.mrb[0].mxu0
      %v720 = vadd.f32 0.0, %v719
      %v721 = vpop.f32.mrb[0].mxu0
      %v722 = vadd.f32 0.0, %v721
      %v723 = vpop.f32.mrb[0].mxu0
      %v724 = vpop.f32.mrb[0].mxu0
      %725 = vdwg.mxu0
      %v726 = vadd.f32 %v648, %v720
      %v727 = vadd.f32 %v649, %v722
      %728 = vrot.lane.b32.xlu0 %v281, 113
      %v729 = vpop.permute.xlu0 %728
      %730 = vrot.lane.b32.xlu0 %v283, 113
      %v731 = vpop.permute.xlu0 %730
      %vm732 = vcmp.lt.s32.totalorder %v289, 113
      %v733 = vsel %vm732, %v729, %v731
      %v734 = vsel %vm732, %v731, %v729
      %s735 = scalar_lea.vmem %s5, 12
      %v736 = vld [vmem:[%s735] sm:$0x3]
      %v738 = vlaneseq
      %v739 = vshrl.u32 %v738, 7
      %v740 = vsub.s32 0, %v739
      %v741 = vrot.slane %v736, %v740
      %v742 = vlaneseq
      %v743 = vshrl.u32 %v742, 7
      %v744 = vsub.s32 1, %v743
      %v745 = vrot.slane %v736, %v744
      %v748 = vmul.f32 %v733, %v741
      %v749 = vmul.f32 %v734, %v745
      %s750 = scalar_lea.vmem %s3, 24
      %v751 = vld [vmem:[%s750] sm:$0xf]
      %v752 = vpack.c.bf16 %v748, %v748
      %v753 = vpack.c.bf16 %v749, %v749
      %v755 = vsel %vm336, %v751, 0
      %v758 = vsel %vm340, %v752, 0
      %v761 = vsel %vm340, %v753, 0
      %763 = vmatprep.subr.bf16.mxu0 %v761
      %764 = vmatpush1.bf16.msra.mxu0 %v758
      %765 = vmatprep.subr.bf16.mxu0 0
      %766 = vmatpush1.bf16.msra.mxu0 0
      %767 = vmatprep.subr.bf16.mxu0 0
      %768 = vmatpush1.bf16.msra.mxu0 0
      %769 = vmatprep.subr.bf16.mxu0 0
      %770 = vmatpush1.bf16.msra.mxu0 0
      %771 = vmatprep.subr.bf16.mxu0 0
      %772 = vmatpush1.bf16.msra.mxu0 0
      %773 = vmatprep.subr.bf16.mxu0 0
      %774 = vmatpush1.bf16.msra.mxu0 0
      %775 = vmatprep.subr.bf16.mxu0 0
      %776 = vmatpush1.bf16.msra.mxu0 0
      %777 = vmatprep.subr.bf16.mxu0 0
      %778 = vmatpush1.bf16.msra.mxu0 0
      %779 = vmatprep.subr.bf16.mxu0 0
      %780 = vmatpush1.bf16.msra.mxu0 0
      %781 = vmatprep.subr.bf16.mxu0 0
      %782 = vmatpush1.bf16.msra.mxu0 0
      %783 = vmatprep.subr.bf16.mxu0 0
      %784 = vmatpush1.bf16.msra.mxu0 0
      %785 = vmatprep.subr.bf16.mxu0 0
      %786 = vmatpush1.bf16.msra.mxu0 0
      %787 = vmatprep.subr.bf16.mxu0 0
      %788 = vmatpush1.bf16.msra.mxu0 0
      %789 = vmatprep.subr.bf16.mxu0 0
      %790 = vmatpush1.bf16.msra.mxu0 0
      %791 = vmatprep.subr.bf16.mxu0 0
      %792 = vmatpush1.bf16.msra.mxu0 0
      %793 = vmatprep.subr.bf16.mxu0 0
      %794 = vmatpush1.bf16.msra.mxu0 0
      %795 = vmatprep.mubr.bf16.mxu0 0
      %796 = vmatmul.mubr.bf16.gmra.mrb[0].mxu0 %v755
      %v797 = vpop.f32.mrb[0].mxu0
      %v798 = vadd.f32 0.0, %v797
      %v799 = vpop.f32.mrb[0].mxu0
      %v800 = vadd.f32 0.0, %v799
      %v801 = vpop.f32.mrb[0].mxu0
      %v802 = vpop.f32.mrb[0].mxu0
      %803 = vdwg.mxu0
      %v804 = vadd.f32 %v726, %v798
      %v805 = vadd.f32 %v727, %v800
      %806 = vrot.lane.b32.xlu0 %v281, 112
      %v807 = vpop.permute.xlu0 %806
      %808 = vrot.lane.b32.xlu0 %v283, 112
      %v809 = vpop.permute.xlu0 %808
      %vm810 = vcmp.lt.s32.totalorder %v289, 112
      %v811 = vsel %vm810, %v807, %v809
      %v812 = vsel %vm810, %v809, %v807
      %s813 = scalar_lea.vmem %s5, 14
      %v814 = vld [vmem:[%s813] sm:$0x3]
      %v816 = vlaneseq
      %v817 = vshrl.u32 %v816, 7
      %v818 = vsub.s32 0, %v817
      %v819 = vrot.slane %v814, %v818
      %v820 = vlaneseq
      %v821 = vshrl.u32 %v820, 7
      %v822 = vsub.s32 1, %v821
      %v823 = vrot.slane %v814, %v822
      %v826 = vmul.f32 %v811, %v819
      %v827 = vmul.f32 %v812, %v823
      %s828 = scalar_lea.vmem %s3, 28
      %v829 = vld [vmem:[%s828] sm:$0xf]
      %v830 = vpack.c.bf16 %v826, %v826
      %v831 = vpack.c.bf16 %v827, %v827
      %v833 = vsel %vm336, %v829, 0
      %v836 = vsel %vm340, %v830, 0
      %v839 = vsel %vm340, %v831, 0
      %841 = vmatprep.subr.bf16.mxu0 %v839
      %842 = vmatpush1.bf16.msra.mxu0 %v836
      %843 = vmatprep.subr.bf16.mxu0 0
      %844 = vmatpush1.bf16.msra.mxu0 0
      %845 = vmatprep.subr.bf16.mxu0 0
      %846 = vmatpush1.bf16.msra.mxu0 0
      %847 = vmatprep.subr.bf16.mxu0 0
      %848 = vmatpush1.bf16.msra.mxu0 0
      %849 = vmatprep.subr.bf16.mxu0 0
      %850 = vmatpush1.bf16.msra.mxu0 0
      %851 = vmatprep.subr.bf16.mxu0 0
      %852 = vmatpush1.bf16.msra.mxu0 0
      %853 = vmatprep.subr.bf16.mxu0 0
      %854 = vmatpush1.bf16.msra.mxu0 0
      %855 = vmatprep.subr.bf16.mxu0 0
      %856 = vmatpush1.bf16.msra.mxu0 0
      %857 = vmatprep.subr.bf16.mxu0 0
      %858 = vmatpush1.bf16.msra.mxu0 0
      %859 = vmatprep.subr.bf16.mxu0 0
      %860 = vmatpush1.bf16.msra.mxu0 0
      %861 = vmatprep.subr.bf16.mxu0 0
      %862 = vmatpush1.bf16.msra.mxu0 0
      %863 = vmatprep.subr.bf16.mxu0 0
      %864 = vmatpush1.bf16.msra.mxu0 0
      %865 = vmatprep.subr.bf16.mxu0 0
      %866 = vmatpush1.bf16.msra.mxu0 0
      %867 = vmatprep.subr.bf16.mxu0 0
      %868 = vmatpush1.bf16.msra.mxu0 0
      %869 = vmatprep.subr.bf16.mxu0 0
      %870 = vmatpush1.bf16.msra.mxu0 0
      %871 = vmatprep.subr.bf16.mxu0 0
      %872 = vmatpush1.bf16.msra.mxu0 0
      %873 = vmatprep.mubr.bf16.mxu0 0
      %874 = vmatmul.mubr.bf16.gmra.mrb[0].mxu0 %v833
      %v875 = vpop.f32.mrb[0].mxu0
      %v876 = vadd.f32 0.0, %v875
      %v877 = vpop.f32.mrb[0].mxu0
      %v878 = vadd.f32 0.0, %v877
      %v879 = vpop.f32.mrb[0].mxu0
      %v880 = vpop.f32.mrb[0].mxu0
      %881 = vdwg.mxu0
      %v882 = vadd.f32 %v804, %v876
      %v883 = vadd.f32 %v805, %v878
      %884 = vrot.lane.b32.xlu0 %v281, 111
      %v885 = vpop.permute.xlu0 %884
      %886 = vrot.lane.b32.xlu0 %v283, 111
      %v887 = vpop.permute.xlu0 %886
      %vm888 = vcmp.lt.s32.totalorder %v289, 111
      %v889 = vsel %vm888, %v885, %v887
      %v890 = vsel %vm888, %v887, %v885
      %s891 = scalar_lea.vmem %s5, 16
      %v892 = vld [vmem:[%s891] sm:$0x3]
      %v894 = vlaneseq
      %v895 = vshrl.u32 %v894, 7
      %v896 = vsub.s32 0, %v895
      %v897 = vrot.slane %v892, %v896
      %v898 = vlaneseq
      %v899 = vshrl.u32 %v898, 7
      %v900 = vsub.s32 1, %v899
      %v901 = vrot.slane %v892, %v900
      %v904 = vmul.f32 %v889, %v897
      %v905 = vmul.f32 %v890, %v901
      %s906 = scalar_lea.vmem %s3, 32
      %v907 = vld [vmem:[%s906] sm:$0xf]
      %v908 = vpack.c.bf16 %v904, %v904
      %v909 = vpack.c.bf16 %v905, %v905
      %v911 = vsel %vm336, %v907, 0
      %v914 = vsel %vm340, %v908, 0
      %v917 = vsel %vm340, %v909, 0
      %919 = vmatprep.subr.bf16.mxu0 %v917
      %920 = vmatpush1.bf16.msra.mxu0 %v914
      %921 = vmatprep.subr.bf16.mxu0 0
      %922 = vmatpush1.bf16.msra.mxu0 0
      %923 = vmatprep.subr.bf16.mxu0 0
      %924 = vmatpush1.bf16.msra.mxu0 0
      %925 = vmatprep.subr.bf16.mxu0 0
      %926 = vmatpush1.bf16.msra.mxu0 0
      %927 = vmatprep.subr.bf16.mxu0 0
      %928 = vmatpush1.bf16.msra.mxu0 0
      %929 = vmatprep.subr.bf16.mxu0 0
      %930 = vmatpush1.bf16.msra.mxu0 0
      %931 = vmatprep.subr.bf16.mxu0 0
      %932 = vmatpush1.bf16.msra.mxu0 0
      %933 = vmatprep.subr.bf16.mxu0 0
      %934 = vmatpush1.bf16.msra.mxu0 0
      %935 = vmatprep.subr.bf16.mxu0 0
      %936 = vmatpush1.bf16.msra.mxu0 0
      %937 = vmatprep.subr.bf16.mxu0 0
      %938 = vmatpush1.bf16.msra.mxu0 0
      %939 = vmatprep.subr.bf16.mxu0 0
      %940 = vmatpush1.bf16.msra.mxu0 0
      %941 = vmatprep.subr.bf16.mxu0 0
      %942 = vmatpush1.bf16.msra.mxu0 0
      %943 = vmatprep.subr.bf16.mxu0 0
      %944 = vmatpush1.bf16.msra.mxu0 0
      %945 = vmatprep.subr.bf16.mxu0 0
      %946 = vmatpush1.bf16.msra.mxu0 0
      %947 = vmatprep.subr.bf16.mxu0 0
      %948 = vmatpush1.bf16.msra.mxu0 0
      %949 = vmatprep.subr.bf16.mxu0 0
      %950 = vmatpush1.bf16.msra.mxu0 0
      %951 = vmatprep.mubr.bf16.mxu0 0
      %952 = vmatmul.mubr.bf16.gmra.mrb[0].mxu0 %v911
      %v953 = vpop.f32.mrb[0].mxu0
      %v954 = vadd.f32 0.0, %v953
      %v955 = vpop.f32.mrb[0].mxu0
      %v956 = vadd.f32 0.0, %v955
      %v957 = vpop.f32.mrb[0].mxu0
      %v958 = vpop.f32.mrb[0].mxu0
      %959 = vdwg.mxu0
      %v960 = vadd.f32 %v882, %v954
      %v961 = vadd.f32 %v883, %v956
      %v962 = vld [vmem:[%s4] sm:$0xff]
      %964 = vset.pattern.permute.xlu0 0
      %965 = vperm.xlu0 %964, %v962
      %v966 = vpop.permute.xlu0 %965
      %v968 = vadd.f32 %v960, %v966
      %v969 = vadd.f32 %v961, %v966
      %970 = vst [vmem:[%s251] sm:$0xff] %v968
      %971 = vst [vmem:[%s251 + $0x8] sm:$0xff] %v969
      %p972 = scmp.lt.s32.totalorder %s17, 1
      %s973 = scalar_select %p972, %s17, 1
      %s974 = smul.addr %s973, 2
      %s975 = smul.addr %s974, 8
      %s976 = scalar_lea.vmem %s6, %s975
      // Predicated region
      $region45: #{continus_paralle_conv.3} parent=43 // pred_check
        %p977 = pneg %p166
      $region46: #{continus_paralle_conv.3} parent=43 // pred_check_branch
        %979 = sbr.rel (%p977) target = $region48
      $region47: #{continus_paralle_conv.3} parent=43 // pred_region
        _
      $region48: #{continus_paralle_conv.3} parent=43 // pred_fallthru
        _
    $region44: #{continus_paralle_conv.3} parent=5 // pred_fallthru
      _
    %p980 = scmp.le.s32.totalorder 2, %s12
    // Predicated region
    $region49: #{continus_paralle_conv.3} parent=5 // pred_check
      %p981 = pneg %p980
    $region50: #{continus_paralle_conv.3} parent=5 // pred_check_branch
      %983 = sbr.rel (%p981) target = $region52
    $region51: #{continus_paralle_conv.3} parent=5 // pred_region
      %s984 = ssub.s32 %s12, 2
      // Predicated region
      $region53: #{continus_paralle_conv.3} parent=51 // pred_check
        %p985 = pneg %p172
      $region54: #{continus_paralle_conv.3} parent=51 // pred_check_branch
        %987 = sbr.rel (%p985) target = $region56
      $region55: #{continus_paralle_conv.3} parent=51 // pred_region
        %p988 = scmp.lt.s32.totalorder %s18, 1
        %s989 = scalar_select %p988, %s18, 1
        %s990 = smul.addr %s989, 2
        %s991 = smul.addr %s990, 8
        %s992 = scalar_lea.vmem %s6, %s991
      $region56: #{continus_paralle_conv.3} parent=51 // pred_fallthru
        _
    $region52: #{continus_paralle_conv.3} parent=5 // pred_fallthru
      _
  $region6: #{continus_paralle_conv.3} parent=0 // loop_footer
    %s16 = sadd.s32 1, %s12
  $region7: #{continus_paralle_conv.3} parent=0 // loop_footer_branch
    %11 = sbr.rel target = $region3
  $region8: #{continus_paralle_conv.3} parent=0 // loop_exit
    _

</llo_original>
